<compile_context>
chip_gen: v6e
topology: v6e:2x2x1
jax: 0.10.0
libtpu: 0.0.40
codegen_flags: <defaults>
</compile_context>

<pallas_src>
import math

import jax
import jax.numpy as jnp
from jax.experimental import pallas as pl
from jax.experimental.pallas import tpu as pltpu

LN_EPS = 1e-5


def _layernorm(x, gamma, beta, eps=LN_EPS):
    mean = jnp.mean(x, axis=-1, keepdims=True)
    var = jnp.mean(jnp.square(x - mean), axis=-1, keepdims=True)
    return (x - mean) * jax.lax.rsqrt(var + eps) * gamma + beta


def _gelu(x):
    # TODO(synk): ACT2FN["gelu"] is the exact erf-based GELU; erf has no Mosaic
    # lowering, so the tanh approximation (EUP-friendly) is used instead.
    c = math.sqrt(2.0 / math.pi)
    return 0.5 * x * (1.0 + jnp.tanh(c * (x + 0.044715 * x * x * x)))


def make_kernel(S, C, H, num_heads):
    head_dim = H // num_heads
    scale = 1.0 / math.sqrt(head_dim)
    # dot_general: contract last dim of both operands (== q @ k.T, no transpose)
    qkT_dims = (((1,), (1,)), ((), ()))

    def kernel(hs_ref, colemb_ref, colcat_ref, vmask_ref, m23_ref,
               Wfuse_ref, Wqkv_ref, Wop_ref, bqkv_ref, vvec_ref,
               out_ref, ctx_scratch):
        hs = hs_ref[0]            # (S, H)  bf16  encoder output, this batch elem
        col = colemb_ref[0]       # (C, H)  bf16  column embeddings
        cat = colcat_ref[0]       # (C, 1)  i32   column categories
        vm = vmask_ref[0]         # (S, 1)  i32   value_mask (0 .. C)
        m23 = m23_ref[0]          # (2, S)  f32   [part2_mask; part3_mask]

        Wfuse = Wfuse_ref[...]    # (2H, H) bf16  [Wd ; Wdc] stacked along K
        Wqkv = Wqkv_ref[...]      # (H, 3H) bf16  [Wq | Wk | Wv]
        Wo = Wop_ref[0]           # (H, H)  bf16  attention output dense
        Wp = Wop_ref[1]           # (H, H)  bf16  CLS projection dense
        bqkv = bqkv_ref[...]      # (1, 3H) f32
        V = vvec_ref[...]         # (8, H)  f32
        b_fuse = V[0:1, :]        # bd + bdc
        bo = V[1:2, :]
        g1, be1 = V[2:3, :], V[3:4, :]
        bp = V[4:5, :]
        g2, be2 = V[5:6, :], V[6:7, :]

        # ---- hidden_states_col: value_mask -> gated column-embedding gather --
        # map[0]=0; map[idx+1]=column_embedding[idx] if category==1 else 0.
        # One-hot (0/1) is exact in bf16, so the gather matmul runs in bf16.
        col_idx = jax.lax.broadcasted_iota(jnp.int32, (S, C), 1) + 1   # 1..C
        onehot = (vm == col_idx).astype(jnp.bfloat16)                   # (S, C)
        gate = (cat == 1).astype(jnp.bfloat16)                          # (C, 1)
        hs_col = jnp.dot(onehot, col * gate,
                         preferred_element_type=jnp.float32
                         ).astype(jnp.bfloat16)                         # (S, H)

        # ---- FusionLayer: dense(hs) + dense_col(hs_col) fused on K, + GELU ---
        x_cat = jnp.concatenate([hs, hs_col], axis=-1)                  # (S, 2H)
        fused = _gelu(jnp.dot(x_cat, Wfuse,
                              preferred_element_type=jnp.float32) + b_fuse)
        fused_bf = fused.astype(jnp.bfloat16)                           # (S, H)

        # ---- RobertaAttention: fused QKV projection ----
        qkv = jnp.dot(fused_bf, Wqkv,
                      preferred_element_type=jnp.float32) + bqkv        # (S, 3H)

        # Per-head attention; contexts written to a VMEM scratch via static
        # lane slices (no concatenate).
        # TODO(synk): for large S (>~1-2K) replace the full (S,S) score
        # materialization with a tiled online-softmax (flash-style) loop.
        for h in range(num_heads):
            lo, hi = h * head_dim, (h + 1) * head_dim
            q_h = (qkv[:, lo:hi] * scale).astype(jnp.bfloat16)
            k_h = qkv[:, H + lo:H + hi].astype(jnp.bfloat16)
            v_h = qkv[:, 2 * H + lo:2 * H + hi].astype(jnp.bfloat16)
            s = jax.lax.dot_general(q_h, k_h, qkT_dims,
                                    preferred_element_type=jnp.float32)  # (S,S)
            m = jnp.max(s, axis=-1, keepdims=True)
            e = jnp.exp(s - m)
            p = e * pl.reciprocal(jnp.sum(e, axis=-1, keepdims=True),
                                  approx=True)
            ctx_scratch[:, lo:hi] = jnp.dot(
                p.astype(jnp.bfloat16), v_h,
                preferred_element_type=jnp.float32).astype(jnp.bfloat16)

        # ---- RobertaSelfOutput: dense + residual LayerNorm (f32) ----
        attn_out = jnp.dot(ctx_scratch[...], Wo,
                           preferred_element_type=jnp.float32) + bo
        hidden = _layernorm(attn_out + fused, g1, be1)                   # (S, H)
        hidden_bf = hidden.astype(jnp.bfloat16)

        # ---- part1: CLS -> project (Linear + LayerNorm) ----
        cls = hidden_bf[0:1, :]                                          # (1, H)
        part1 = _layernorm(
            jnp.dot(cls, Wp, preferred_element_type=jnp.float32) + bp, g2, be2)

        # ---- part2 / part3: masked mean pooling as one (2,S)@(S,H) matmul ----
        # TODO(synk): pooling_masked_part's exact `method` is external; masked
        # mean (the common 'mean' part_pooling) is implemented here.
        counts = jnp.sum(m23, axis=-1, keepdims=True)                    # (2, 1)
        inv = pl.reciprocal(jnp.maximum(counts, 1e-9), approx=True)
        pooled = jnp.dot(m23.astype(jnp.bfloat16), hidden_bf,
                         preferred_element_type=jnp.float32) * inv       # (2, H)

        # ---- concat [part1, part2, part3]: direct lane-slice stores ----
        out_ref[0, :, 0:H] = part1
        out_ref[0, :, H:2 * H] = pooled[0:1, :]
        out_ref[0, :, 2 * H:3 * H] = pooled[1:2, :]

    return kernel


def _vmem_limit_bytes(B, S, C, H):
    bf, f32 = 2, 4
    weights = (2 * H * H + 3 * H * H + 2 * H * H) * bf + (3 * H + 8 * H) * f32
    per_b_in = (S * H + C * H) * bf + (C + S) * 4 + 2 * S * f32
    per_b_out = 3 * H * f32
    temps = ((S * 2 * H) * bf + (S * 3 * H) * f32 + 4 * S * H * f32
             + 3 * S * S * f32 + S * H * bf)
    est = 2 * (weights + per_b_in + per_b_out) + temps   # 2x: double buffering
    return int(min(max(2 * est, 32 << 20), 64 << 20))    # headroom, v7x-safe cap


def global_fusion_forward(hidden_states, column_embeddings, column_categories,
                          value_mask, part2_mask, part3_mask,
                          Wstack, vstack, *, num_heads=4):
    B, S, H = hidden_states.shape
    C = column_embeddings.shape[1]
    assert H % num_heads == 0

    kernel = make_kernel(S, C, H, num_heads)

    # ---- repack parameters for the fused matmuls (done once, outside grid) --
    # Wstack order: [Wd, Wdc, Wq, Wk, Wv, Wo, Wp]  each (H, H), [in, out]
    Wfuse = jnp.concatenate([Wstack[0], Wstack[1]], axis=0).astype(jnp.bfloat16)
    Wqkv = jnp.concatenate([Wstack[2], Wstack[3], Wstack[4]],
                           axis=1).astype(jnp.bfloat16)
    Wop = jnp.stack([Wstack[5], Wstack[6]]).astype(jnp.bfloat16)
    # vstack order: [bd, bdc, bq, bk, bv, bo, g1, be1, bp, g2, be2]
    vstack = vstack.astype(jnp.float32)
    bqkv = jnp.concatenate([vstack[2], vstack[3], vstack[4]]).reshape(1, 3 * H)
    vvec = jnp.stack([vstack[0] + vstack[1], vstack[5], vstack[6], vstack[7],
                      vstack[8], vstack[9], vstack[10],
                      jnp.zeros((H,), jnp.float32)])                 # (8, H)

    colcat = column_categories.astype(jnp.int32).reshape(B, C, 1)
    vmask = value_mask.astype(jnp.int32).reshape(B, S, 1)
    m23 = jnp.stack([part2_mask.astype(jnp.float32),
                     part3_mask.astype(jnp.float32)], axis=1)        # (B, 2, S)

    # NOTE: Wfuse/Wqkv/Wop/bqkv/vvec have constant index_maps; Pallas only DMAs
    # them once.  On v7x (64 MiB VMEM) their double-buffer allocation can be
    # removed with pipeline_mode=pl.Buffered(1) once verified on the target
    # jax build; bf16 already halves the footprint.
    out = pl.pallas_call(
        kernel,
        out_shape=jax.ShapeDtypeStruct((B, 1, 3 * H), jnp.float32),
        grid_spec=pltpu.PrefetchScalarGridSpec(
            num_scalar_prefetch=0,
            grid=(B,),
            in_specs=[
                pl.BlockSpec((1, S, H), lambda b: (b, 0, 0)),    # hidden_states
                pl.BlockSpec((1, C, H), lambda b: (b, 0, 0)),    # column_embeddings
                pl.BlockSpec((1, C, 1), lambda b: (b, 0, 0)),    # column_categories
                pl.BlockSpec((1, S, 1), lambda b: (b, 0, 0)),    # value_mask
                pl.BlockSpec((1, 2, S), lambda b: (b, 0, 0)),    # part2/3 masks
                pl.BlockSpec((2 * H, H), lambda b: (0, 0)),      # Wfuse
                pl.BlockSpec((H, 3 * H), lambda b: (0, 0)),      # Wqkv
                pl.BlockSpec((2, H, H), lambda b: (0, 0, 0)),    # Wo, Wp
                pl.BlockSpec((1, 3 * H), lambda b: (0, 0)),      # bqkv
                pl.BlockSpec((8, H), lambda b: (0, 0)),          # bias/LN vecs
            ],
            out_specs=pl.BlockSpec((1, 1, 3 * H), lambda b: (b, 0, 0)),
            scratch_shapes=[pltpu.VMEM((S, H), jnp.bfloat16)],   # ctx per head
        ),
        compiler_params=pltpu.CompilerParams(
            dimension_semantics=("parallel",),
            vmem_limit_bytes=_vmem_limit_bytes(B, S, C, H)),
    )(hidden_states.astype(jnp.bfloat16),
      column_embeddings.astype(jnp.bfloat16),
      colcat, vmask, m23,
      Wfuse, Wqkv, Wop, bqkv, vvec)

    return out.reshape(B, 3 * H)


if __name__ == "__main__":
    B, S, H, C, NUM_HEADS = 2, 8, 32, 4, 4

    key = jax.random.PRNGKey(0)
    ks = jax.random.split(key, 8)

    # External sub-model outputs, taken as inputs (see header comment).
    hidden_states = jax.random.normal(ks[0], (B, S, H), jnp.float32)
    column_embeddings = jax.random.normal(ks[1], (B, C, H), jnp.float32)
    column_categories = jax.random.randint(ks[2], (B, C), 0, 2)     # {0, 1}
    value_mask = jax.random.randint(ks[3], (B, S), 0, C + 1)        # 0 .. C
    part2_mask = (jax.random.uniform(ks[4], (B, S)) > 0.5).astype(jnp.float32)
    part3_mask = (jax.random.uniform(ks[5], (B, S)) > 0.5).astype(jnp.float32)
    part2_mask = part2_mask.at[:, 1].set(1.0)   # ensure non-empty parts
    part3_mask = part3_mask.at[:, 2].set(1.0)

    # Deterministic synthetic parameters.
    # Wstack order: [dense, dense_col, Wq, Wk, Wv, Wo(attn out), Wp(project)]
    Wstack = 0.02 * jax.random.normal(ks[6], (7, H, H), jnp.float32)
    # vstack order: [bd, bdc, bq, bk, bv, bo, ln1_gamma, ln1_beta,
    #                bp, ln2_gamma, ln2_beta]
    vstack = 0.02 * jax.random.normal(ks[7], (11, H), jnp.float32)
    vstack = vstack.at[6].set(1.0).at[7].set(0.0)    # attn output LayerNorm
    vstack = vstack.at[9].set(1.0).at[10].set(0.0)   # project LayerNorm

    out = global_fusion_forward(hidden_states, column_embeddings,
                                column_categories, value_mask,
                                part2_mask, part3_mask,
                                Wstack, vstack, num_heads=NUM_HEADS)
    jax.block_until_ready(out)
    assert out.shape == (B, 3 * H) and bool(jnp.all(jnp.isfinite(out)))
    print("KERNEL_OK")
</pallas_src>

<mosaic_0001>
module attributes {stable_mosaic.version = 11 : i64} {
  func.func @kernel(%arg0: i32, %arg1: memref<1x8x32xbf16, #tpu.memory_space<vmem>>, %arg2: memref<1x4x32xbf16, #tpu.memory_space<vmem>>, %arg3: memref<1x4x1xi32, #tpu.memory_space<vmem>>, %arg4: memref<1x8x1xi32, #tpu.memory_space<vmem>>, %arg5: memref<1x2x8xf32, #tpu.memory_space<vmem>>, %arg6: memref<64x32xbf16, #tpu.memory_space<vmem>>, %arg7: memref<32x96xbf16, #tpu.memory_space<vmem>>, %arg8: memref<2x32x32xbf16, #tpu.memory_space<vmem>>, %arg9: memref<1x96xf32, #tpu.memory_space<vmem>>, %arg10: memref<8x32xf32, #tpu.memory_space<vmem>>, %arg11: memref<1x1x96xf32, #tpu.memory_space<vmem>>, %arg12: memref<8x32xbf16, #tpu.memory_space<vmem>>) attributes {dimension_semantics = [#tpu.dimension_semantics<parallel>], iteration_bounds = array<i64: 2>, scalar_prefetch = 0 : i64, scratch_operands = 1 : i64, tpu.core_type = #tpu.core_type<tc>, window_params = [{transform_indices = @transform_0, window_bounds = array<i64: 1, 8, 32>}, {transform_indices = @transform_1, window_bounds = array<i64: 1, 4, 32>}, {transform_indices = @transform_2, window_bounds = array<i64: 1, 4, 1>}, {transform_indices = @transform_3, window_bounds = array<i64: 1, 8, 1>}, {transform_indices = @transform_4, window_bounds = array<i64: 1, 2, 8>}, {pipeline_mode = #tpu.pipeline_mode<synchronous>, transform_indices = @transform_5, window_bounds = array<i64: 64, 32>}, {pipeline_mode = #tpu.pipeline_mode<synchronous>, transform_indices = @transform_6, window_bounds = array<i64: 32, 96>}, {pipeline_mode = #tpu.pipeline_mode<synchronous>, transform_indices = @transform_7, window_bounds = array<i64: 2, 32, 32>}, {pipeline_mode = #tpu.pipeline_mode<synchronous>, transform_indices = @transform_8, window_bounds = array<i64: 1, 96>}, {pipeline_mode = #tpu.pipeline_mode<synchronous>, transform_indices = @transform_9, window_bounds = array<i64: 8, 32>}, {transform_indices = @transform_10, window_bounds = array<i64: 1, 1, 96>}]} {
    %c0 = arith.constant 0 : index
    %c0_0 = arith.constant 0 : index
    %c0_1 = arith.constant 0 : index
    %0 = vector.load %arg1[%c0, %c0_0, %c0_1] : memref<1x8x32xbf16, #tpu.memory_space<vmem>>, vector<1x8x32xbf16>
    %1 = vector.shape_cast %0 : vector<1x8x32xbf16> to vector<8x32xbf16>
    %c0_2 = arith.constant 0 : index
    %c0_3 = arith.constant 0 : index
    %c0_4 = arith.constant 0 : index
    %2 = vector.load %arg2[%c0_2, %c0_3, %c0_4] : memref<1x4x32xbf16, #tpu.memory_space<vmem>>, vector<1x4x32xbf16>
    %3 = vector.shape_cast %2 : vector<1x4x32xbf16> to vector<4x32xbf16>
    %c0_5 = arith.constant 0 : index
    %c0_6 = arith.constant 0 : index
    %c0_7 = arith.constant 0 : index
    %4 = vector.load %arg3[%c0_5, %c0_6, %c0_7] : memref<1x4x1xi32, #tpu.memory_space<vmem>>, vector<1x4x1xi32>
    %5 = vector.shape_cast %4 : vector<1x4x1xi32> to vector<4x1xi32>
    %c0_8 = arith.constant 0 : index
    %c0_9 = arith.constant 0 : index
    %c0_10 = arith.constant 0 : index
    %6 = vector.load %arg4[%c0_8, %c0_9, %c0_10] : memref<1x8x1xi32, #tpu.memory_space<vmem>>, vector<1x8x1xi32>
    %7 = vector.shape_cast %6 : vector<1x8x1xi32> to vector<8x1xi32>
    %c0_11 = arith.constant 0 : index
    %c0_12 = arith.constant 0 : index
    %c0_13 = arith.constant 0 : index
    %8 = vector.load %arg5[%c0_11, %c0_12, %c0_13] : memref<1x2x8xf32, #tpu.memory_space<vmem>>, vector<1x2x8xf32>
    %9 = vector.shape_cast %8 : vector<1x2x8xf32> to vector<2x8xf32>
    %c0_14 = arith.constant 0 : index
    %c0_15 = arith.constant 0 : index
    %10 = vector.load %arg6[%c0_14, %c0_15] : memref<64x32xbf16, #tpu.memory_space<vmem>>, vector<64x32xbf16>
    %c0_16 = arith.constant 0 : index
    %c0_17 = arith.constant 0 : index
    %11 = vector.load %arg7[%c0_16, %c0_17] : memref<32x96xbf16, #tpu.memory_space<vmem>>, vector<32x96xbf16>
    %c0_18 = arith.constant 0 : index
    %c0_19 = arith.constant 0 : index
    %c0_20 = arith.constant 0 : index
    %12 = vector.load %arg8[%c0_18, %c0_19, %c0_20] : memref<2x32x32xbf16, #tpu.memory_space<vmem>>, vector<1x32x32xbf16>
    %13 = vector.shape_cast %12 : vector<1x32x32xbf16> to vector<32x32xbf16>
    %c1 = arith.constant 1 : index
    %c0_21 = arith.constant 0 : index
    %c0_22 = arith.constant 0 : index
    %14 = vector.load %arg8[%c1, %c0_21, %c0_22] : memref<2x32x32xbf16, #tpu.memory_space<vmem>>, vector<1x32x32xbf16>
    %15 = vector.shape_cast %14 : vector<1x32x32xbf16> to vector<32x32xbf16>
    %c0_23 = arith.constant 0 : index
    %c0_24 = arith.constant 0 : index
    %16 = vector.load %arg9[%c0_23, %c0_24] : memref<1x96xf32, #tpu.memory_space<vmem>>, vector<1x96xf32>
    %c0_25 = arith.constant 0 : index
    %c0_26 = arith.constant 0 : index
    %17 = vector.load %arg10[%c0_25, %c0_26] : memref<8x32xf32, #tpu.memory_space<vmem>>, vector<8x32xf32>
    %18 = vector.extract_strided_slice %17 {offsets = [0, 0], sizes = [1, 32], strides = [1, 1]} : vector<8x32xf32> to vector<1x32xf32>
    %19 = vector.extract_strided_slice %17 {offsets = [1, 0], sizes = [1, 32], strides = [1, 1]} : vector<8x32xf32> to vector<1x32xf32>
    %20 = vector.extract_strided_slice %17 {offsets = [2, 0], sizes = [1, 32], strides = [1, 1]} : vector<8x32xf32> to vector<1x32xf32>
    %21 = vector.extract_strided_slice %17 {offsets = [3, 0], sizes = [1, 32], strides = [1, 1]} : vector<8x32xf32> to vector<1x32xf32>
    %22 = vector.extract_strided_slice %17 {offsets = [4, 0], sizes = [1, 32], strides = [1, 1]} : vector<8x32xf32> to vector<1x32xf32>
    %23 = vector.extract_strided_slice %17 {offsets = [5, 0], sizes = [1, 32], strides = [1, 1]} : vector<8x32xf32> to vector<1x32xf32>
    %24 = vector.extract_strided_slice %17 {offsets = [6, 0], sizes = [1, 32], strides = [1, 1]} : vector<8x32xf32> to vector<1x32xf32>
    %25 = tpu.iota {dimensions = array<i32: 1>} : vector<8x4xi32>
    %c1_i32 = arith.constant 1 : i32
    %26 = vector.broadcast %c1_i32 : i32 to vector<8x4xi32>
    %27 = arith.addi %25, %26 : vector<8x4xi32>
    %28 = vector.broadcast %7 : vector<8x1xi32> to vector<8x4xi32>
    %29 = arith.cmpi eq, %28, %27 : vector<8x4xi32>
    %30 = arith.extui %29 : vector<8x4xi1> to vector<8x4xi32>
    %31 = arith.sitofp %30 : vector<8x4xi32> to vector<8x4xf32>
    %32 = arith.truncf %31 : vector<8x4xf32> to vector<8x4xbf16>
    %c1_i32_27 = arith.constant 1 : i32
    %33 = vector.broadcast %c1_i32_27 : i32 to vector<4x1xi32>
    %34 = arith.cmpi eq, %5, %33 : vector<4x1xi32>
    %35 = arith.extui %34 : vector<4x1xi1> to vector<4x1xi32>
    %36 = arith.sitofp %35 : vector<4x1xi32> to vector<4x1xf32>
    %37 = arith.truncf %36 : vector<4x1xf32> to vector<4x1xbf16>
    %38 = vector.broadcast %37 : vector<4x1xbf16> to vector<4x32xbf16>
    %39 = arith.mulf %3, %38 : vector<4x32xbf16>
    %cst = arith.constant dense<0.000000e+00> : vector<8x32xf32>
    %40 = tpu.matmul %32, %39, %cst {dimension_numbers = #tpu.dot_dimension_numbers<[1], [0], [0], [1], [0, 0, 1, 1], [], []>} : vector<8x4xbf16>, vector<4x32xbf16>, vector<8x32xf32> -> vector<8x32xf32>
    %41 = arith.truncf %40 : vector<8x32xf32> to vector<8x32xbf16>
    %42 = tpu.concatenate %1, %41 in 1 : vector<8x32xbf16>, vector<8x32xbf16> -> vector<8x64xbf16>
    %cst_28 = arith.constant dense<0.000000e+00> : vector<8x32xf32>
    %43 = tpu.matmul %42, %10, %cst_28 {dimension_numbers = #tpu.dot_dimension_numbers<[1], [0], [0], [1], [0, 0, 1, 1], [], []>} : vector<8x64xbf16>, vector<64x32xbf16>, vector<8x32xf32> -> vector<8x32xf32>
    %44 = vector.broadcast %18 : vector<1x32xf32> to vector<8x32xf32>
    %45 = arith.addf %43, %44 : vector<8x32xf32>
    %cst_29 = arith.constant 5.000000e-01 : f32
    %46 = vector.broadcast %cst_29 : f32 to vector<8x32xf32>
    %47 = arith.mulf %46, %45 : vector<8x32xf32>
    %cst_30 = arith.constant 4.471500e-02 : f32
    %48 = vector.broadcast %cst_30 : f32 to vector<8x32xf32>
    %49 = arith.mulf %48, %45 : vector<8x32xf32>
    %50 = arith.mulf %49, %45 : vector<8x32xf32>
    %51 = arith.mulf %50, %45 : vector<8x32xf32>
    %52 = arith.addf %45, %51 : vector<8x32xf32>
    %cst_31 = arith.constant 0.797884583 : f32
    %53 = vector.broadcast %cst_31 : f32 to vector<8x32xf32>
    %54 = arith.mulf %53, %52 : vector<8x32xf32>
    %55 = math.tanh %54 : vector<8x32xf32>
    %cst_32 = arith.constant 1.000000e+00 : f32
    %56 = vector.broadcast %cst_32 : f32 to vector<8x32xf32>
    %57 = arith.addf %56, %55 : vector<8x32xf32>
    %58 = arith.mulf %47, %57 : vector<8x32xf32>
    %59 = arith.truncf %58 : vector<8x32xf32> to vector<8x32xbf16>
    %cst_33 = arith.constant dense<0.000000e+00> : vector<8x96xf32>
    %60 = tpu.matmul %59, %11, %cst_33 {dimension_numbers = #tpu.dot_dimension_numbers<[1], [0], [0], [1], [0, 0, 1, 1], [], []>} : vector<8x32xbf16>, vector<32x96xbf16>, vector<8x96xf32> -> vector<8x96xf32>
    %61 = vector.broadcast %16 : vector<1x96xf32> to vector<8x96xf32>
    %62 = arith.addf %60, %61 : vector<8x96xf32>
    %63 = vector.extract_strided_slice %62 {offsets = [0, 0], sizes = [8, 8], strides = [1, 1]} : vector<8x96xf32> to vector<8x8xf32>
    %cst_34 = arith.constant 0.353553385 : f32
    %64 = vector.broadcast %cst_34 : f32 to vector<8x8xf32>
    %65 = arith.mulf %63, %64 : vector<8x8xf32>
    %66 = arith.truncf %65 : vector<8x8xf32> to vector<8x8xbf16>
    %67 = vector.extract_strided_slice %62 {offsets = [0, 32], sizes = [8, 8], strides = [1, 1]} : vector<8x96xf32> to vector<8x8xf32>
    %68 = arith.truncf %67 : vector<8x8xf32> to vector<8x8xbf16>
    %69 = vector.extract_strided_slice %62 {offsets = [0, 64], sizes = [8, 8], strides = [1, 1]} : vector<8x96xf32> to vector<8x8xf32>
    %70 = arith.truncf %69 : vector<8x8xf32> to vector<8x8xbf16>
    %cst_35 = arith.constant dense<0.000000e+00> : vector<8x8xf32>
    %71 = tpu.matmul %66, %68, %cst_35 {dimension_numbers = #tpu.dot_dimension_numbers<[1], [1], [0], [0], [0, 0, 1, 0], [], []>} : vector<8x8xbf16>, vector<8x8xbf16>, vector<8x8xf32> -> vector<8x8xf32>
    %cst_36 = arith.constant dense<0xFF800000> : vector<8xf32>
    %72 = vector.multi_reduction <maximumf>, %71, %cst_36 [1] : vector<8x8xf32> to vector<8xf32>
    %73 = vector.shape_cast %72 : vector<8xf32> to vector<8x1xf32>
    %74 = vector.broadcast %73 : vector<8x1xf32> to vector<8x8xf32>
    %75 = arith.subf %71, %74 : vector<8x8xf32>
    %76 = math.exp %75 : vector<8x8xf32>
    %cst_37 = arith.constant dense<0.000000e+00> : vector<8xf32>
    %77 = vector.multi_reduction <add>, %76, %cst_37 [1] : vector<8x8xf32> to vector<8xf32>
    %78 = vector.shape_cast %77 : vector<8xf32> to vector<8x1xf32>
    %79 = tpu.reciprocal %78 {approx = true} : vector<8x1xf32> -> vector<8x1xf32>
    %80 = vector.broadcast %79 : vector<8x1xf32> to vector<8x8xf32>
    %81 = arith.mulf %76, %80 : vector<8x8xf32>
    %82 = arith.truncf %81 : vector<8x8xf32> to vector<8x8xbf16>
    %cst_38 = arith.constant dense<0.000000e+00> : vector<8x8xf32>
    %83 = tpu.matmul %82, %70, %cst_38 {dimension_numbers = #tpu.dot_dimension_numbers<[1], [0], [0], [1], [0, 0, 1, 1], [], []>} : vector<8x8xbf16>, vector<8x8xbf16>, vector<8x8xf32> -> vector<8x8xf32>
    %84 = arith.truncf %83 : vector<8x8xf32> to vector<8x8xbf16>
    %c0_39 = arith.constant 0 : index
    %c0_40 = arith.constant 0 : index
    %85 = vector.load %arg12[%c0_39, %c0_40] : memref<8x32xbf16, #tpu.memory_space<vmem>>, vector<8x8xbf16>
    tpu.vector_store %arg12[%c0_39, %c0_40], %84 {strides = array<i32>} : memref<8x32xbf16, #tpu.memory_space<vmem>>, vector<8x8xbf16>,
    %86 = vector.extract_strided_slice %62 {offsets = [0, 8], sizes = [8, 8], strides = [1, 1]} : vector<8x96xf32> to vector<8x8xf32>
    %cst_41 = arith.constant 0.353553385 : f32
    %87 = vector.broadcast %cst_41 : f32 to vector<8x8xf32>
    %88 = arith.mulf %86, %87 : vector<8x8xf32>
    %89 = arith.truncf %88 : vector<8x8xf32> to vector<8x8xbf16>
    %90 = vector.extract_strided_slice %62 {offsets = [0, 40], sizes = [8, 8], strides = [1, 1]} : vector<8x96xf32> to vector<8x8xf32>
    %91 = arith.truncf %90 : vector<8x8xf32> to vector<8x8xbf16>
    %92 = vector.extract_strided_slice %62 {offsets = [0, 72], sizes = [8, 8], strides = [1, 1]} : vector<8x96xf32> to vector<8x8xf32>
    %93 = arith.truncf %92 : vector<8x8xf32> to vector<8x8xbf16>
    %cst_42 = arith.constant dense<0.000000e+00> : vector<8x8xf32>
    %94 = tpu.matmul %89, %91, %cst_42 {dimension_numbers = #tpu.dot_dimension_numbers<[1], [1], [0], [0], [0, 0, 1, 0], [], []>} : vector<8x8xbf16>, vector<8x8xbf16>, vector<8x8xf32> -> vector<8x8xf32>
    %cst_43 = arith.constant dense<0xFF800000> : vector<8xf32>
    %95 = vector.multi_reduction <maximumf>, %94, %cst_43 [1] : vector<8x8xf32> to vector<8xf32>
    %96 = vector.shape_cast %95 : vector<8xf32> to vector<8x1xf32>
    %97 = vector.broadcast %96 : vector<8x1xf32> to vector<8x8xf32>
    %98 = arith.subf %94, %97 : vector<8x8xf32>
    %99 = math.exp %98 : vector<8x8xf32>
    %cst_44 = arith.constant dense<0.000000e+00> : vector<8xf32>
    %100 = vector.multi_reduction <add>, %99, %cst_44 [1] : vector<8x8xf32> to vector<8xf32>
    %101 = vector.shape_cast %100 : vector<8xf32> to vector<8x1xf32>
    %102 = tpu.reciprocal %101 {approx = true} : vector<8x1xf32> -> vector<8x1xf32>
    %103 = vector.broadcast %102 : vector<8x1xf32> to vector<8x8xf32>
    %104 = arith.mulf %99, %103 : vector<8x8xf32>
    %105 = arith.truncf %104 : vector<8x8xf32> to vector<8x8xbf16>
    %cst_45 = arith.constant dense<0.000000e+00> : vector<8x8xf32>
    %106 = tpu.matmul %105, %93, %cst_45 {dimension_numbers = #tpu.dot_dimension_numbers<[1], [0], [0], [1], [0, 0, 1, 1], [], []>} : vector<8x8xbf16>, vector<8x8xbf16>, vector<8x8xf32> -> vector<8x8xf32>
    %107 = arith.truncf %106 : vector<8x8xf32> to vector<8x8xbf16>
    %c0_46 = arith.constant 0 : index
    %c8 = arith.constant 8 : index
    %108 = vector.load %arg12[%c0_46, %c8] : memref<8x32xbf16, #tpu.memory_space<vmem>>, vector<8x8xbf16>
    tpu.vector_store %arg12[%c0_46, %c8], %107 {strides = array<i32>} : memref<8x32xbf16, #tpu.memory_space<vmem>>, vector<8x8xbf16>,
    %109 = vector.extract_strided_slice %62 {offsets = [0, 16], sizes = [8, 8], strides = [1, 1]} : vector<8x96xf32> to vector<8x8xf32>
    %cst_47 = arith.constant 0.353553385 : f32
    %110 = vector.broadcast %cst_47 : f32 to vector<8x8xf32>
    %111 = arith.mulf %109, %110 : vector<8x8xf32>
    %112 = arith.truncf %111 : vector<8x8xf32> to vector<8x8xbf16>
    %113 = vector.extract_strided_slice %62 {offsets = [0, 48], sizes = [8, 8], strides = [1, 1]} : vector<8x96xf32> to vector<8x8xf32>
    %114 = arith.truncf %113 : vector<8x8xf32> to vector<8x8xbf16>
    %115 = vector.extract_strided_slice %62 {offsets = [0, 80], sizes = [8, 8], strides = [1, 1]} : vector<8x96xf32> to vector<8x8xf32>
    %116 = arith.truncf %115 : vector<8x8xf32> to vector<8x8xbf16>
    %cst_48 = arith.constant dense<0.000000e+00> : vector<8x8xf32>
    %117 = tpu.matmul %112, %114, %cst_48 {dimension_numbers = #tpu.dot_dimension_numbers<[1], [1], [0], [0], [0, 0, 1, 0], [], []>} : vector<8x8xbf16>, vector<8x8xbf16>, vector<8x8xf32> -> vector<8x8xf32>
    %cst_49 = arith.constant dense<0xFF800000> : vector<8xf32>
    %118 = vector.multi_reduction <maximumf>, %117, %cst_49 [1] : vector<8x8xf32> to vector<8xf32>
    %119 = vector.shape_cast %118 : vector<8xf32> to vector<8x1xf32>
    %120 = vector.broadcast %119 : vector<8x1xf32> to vector<8x8xf32>
    %121 = arith.subf %117, %120 : vector<8x8xf32>
    %122 = math.exp %121 : vector<8x8xf32>
    %cst_50 = arith.constant dense<0.000000e+00> : vector<8xf32>
    %123 = vector.multi_reduction <add>, %122, %cst_50 [1] : vector<8x8xf32> to vector<8xf32>
    %124 = vector.shape_cast %123 : vector<8xf32> to vector<8x1xf32>
    %125 = tpu.reciprocal %124 {approx = true} : vector<8x1xf32> -> vector<8x1xf32>
    %126 = vector.broadcast %125 : vector<8x1xf32> to vector<8x8xf32>
    %127 = arith.mulf %122, %126 : vector<8x8xf32>
    %128 = arith.truncf %127 : vector<8x8xf32> to vector<8x8xbf16>
    %cst_51 = arith.constant dense<0.000000e+00> : vector<8x8xf32>
    %129 = tpu.matmul %128, %116, %cst_51 {dimension_numbers = #tpu.dot_dimension_numbers<[1], [0], [0], [1], [0, 0, 1, 1], [], []>} : vector<8x8xbf16>, vector<8x8xbf16>, vector<8x8xf32> -> vector<8x8xf32>
    %130 = arith.truncf %129 : vector<8x8xf32> to vector<8x8xbf16>
    %c0_52 = arith.constant 0 : index
    %c16 = arith.constant 16 : index
    %131 = vector.load %arg12[%c0_52, %c16] : memref<8x32xbf16, #tpu.memory_space<vmem>>, vector<8x8xbf16>
    tpu.vector_store %arg12[%c0_52, %c16], %130 {strides = array<i32>} : memref<8x32xbf16, #tpu.memory_space<vmem>>, vector<8x8xbf16>,
    %132 = vector.extract_strided_slice %62 {offsets = [0, 24], sizes = [8, 8], strides = [1, 1]} : vector<8x96xf32> to vector<8x8xf32>
    %cst_53 = arith.constant 0.353553385 : f32
    %133 = vector.broadcast %cst_53 : f32 to vector<8x8xf32>
    %134 = arith.mulf %132, %133 : vector<8x8xf32>
    %135 = arith.truncf %134 : vector<8x8xf32> to vector<8x8xbf16>
    %136 = vector.extract_strided_slice %62 {offsets = [0, 56], sizes = [8, 8], strides = [1, 1]} : vector<8x96xf32> to vector<8x8xf32>
    %137 = arith.truncf %136 : vector<8x8xf32> to vector<8x8xbf16>
    %138 = vector.extract_strided_slice %62 {offsets = [0, 88], sizes = [8, 8], strides = [1, 1]} : vector<8x96xf32> to vector<8x8xf32>
    %139 = arith.truncf %138 : vector<8x8xf32> to vector<8x8xbf16>
    %cst_54 = arith.constant dense<0.000000e+00> : vector<8x8xf32>
    %140 = tpu.matmul %135, %137, %cst_54 {dimension_numbers = #tpu.dot_dimension_numbers<[1], [1], [0], [0], [0, 0, 1, 0], [], []>} : vector<8x8xbf16>, vector<8x8xbf16>, vector<8x8xf32> -> vector<8x8xf32>
    %cst_55 = arith.constant dense<0xFF800000> : vector<8xf32>
    %141 = vector.multi_reduction <maximumf>, %140, %cst_55 [1] : vector<8x8xf32> to vector<8xf32>
    %142 = vector.shape_cast %141 : vector<8xf32> to vector<8x1xf32>
    %143 = vector.broadcast %142 : vector<8x1xf32> to vector<8x8xf32>
    %144 = arith.subf %140, %143 : vector<8x8xf32>
    %145 = math.exp %144 : vector<8x8xf32>
    %cst_56 = arith.constant dense<0.000000e+00> : vector<8xf32>
    %146 = vector.multi_reduction <add>, %145, %cst_56 [1] : vector<8x8xf32> to vector<8xf32>
    %147 = vector.shape_cast %146 : vector<8xf32> to vector<8x1xf32>
    %148 = tpu.reciprocal %147 {approx = true} : vector<8x1xf32> -> vector<8x1xf32>
    %149 = vector.broadcast %148 : vector<8x1xf32> to vector<8x8xf32>
    %150 = arith.mulf %145, %149 : vector<8x8xf32>
    %151 = arith.truncf %150 : vector<8x8xf32> to vector<8x8xbf16>
    %cst_57 = arith.constant dense<0.000000e+00> : vector<8x8xf32>
    %152 = tpu.matmul %151, %139, %cst_57 {dimension_numbers = #tpu.dot_dimension_numbers<[1], [0], [0], [1], [0, 0, 1, 1], [], []>} : vector<8x8xbf16>, vector<8x8xbf16>, vector<8x8xf32> -> vector<8x8xf32>
    %153 = arith.truncf %152 : vector<8x8xf32> to vector<8x8xbf16>
    %c0_58 = arith.constant 0 : index
    %c24 = arith.constant 24 : index
    %154 = vector.load %arg12[%c0_58, %c24] : memref<8x32xbf16, #tpu.memory_space<vmem>>, vector<8x8xbf16>
    tpu.vector_store %arg12[%c0_58, %c24], %153 {strides = array<i32>} : memref<8x32xbf16, #tpu.memory_space<vmem>>, vector<8x8xbf16>,
    %c0_59 = arith.constant 0 : index
    %c0_60 = arith.constant 0 : index
    %155 = vector.load %arg12[%c0_59, %c0_60] : memref<8x32xbf16, #tpu.memory_space<vmem>>, vector<8x32xbf16>
    %cst_61 = arith.constant dense<0.000000e+00> : vector<8x32xf32>
    %156 = tpu.matmul %155, %13, %cst_61 {dimension_numbers = #tpu.dot_dimension_numbers<[1], [0], [0], [1], [0, 0, 1, 1], [], []>} : vector<8x32xbf16>, vector<32x32xbf16>, vector<8x32xf32> -> vector<8x32xf32>
    %157 = vector.broadcast %19 : vector<1x32xf32> to vector<8x32xf32>
    %158 = arith.addf %156, %157 : vector<8x32xf32>
    %159 = arith.addf %158, %58 : vector<8x32xf32>
    %cst_62 = arith.constant dense<0.000000e+00> : vector<8xf32>
    %160 = vector.multi_reduction <add>, %159, %cst_62 [1] : vector<8x32xf32> to vector<8xf32>
    %161 = vector.shape_cast %160 : vector<8xf32> to vector<8x1xf32>
    %cst_63 = arith.constant 3.200000e+01 : f32
    %162 = vector.broadcast %cst_63 : f32 to vector<8x1xf32>
    %163 = arith.divf %161, %162 : vector<8x1xf32>
    %164 = vector.broadcast %163 : vector<8x1xf32> to vector<8x32xf32>
    %165 = arith.subf %159, %164 : vector<8x32xf32>
    %166 = arith.mulf %165, %165 : vector<8x32xf32>
    %cst_64 = arith.constant dense<0.000000e+00> : vector<8xf32>
    %167 = vector.multi_reduction <add>, %166, %cst_64 [1] : vector<8x32xf32> to vector<8xf32>
    %168 = vector.shape_cast %167 : vector<8xf32> to vector<8x1xf32>
    %cst_65 = arith.constant 3.200000e+01 : f32
    %169 = vector.broadcast %cst_65 : f32 to vector<8x1xf32>
    %170 = arith.divf %168, %169 : vector<8x1xf32>
    %171 = vector.broadcast %163 : vector<8x1xf32> to vector<8x32xf32>
    %172 = arith.subf %159, %171 : vector<8x32xf32>
    %cst_66 = arith.constant 9.99999974E-6 : f32
    %173 = vector.broadcast %cst_66 : f32 to vector<8x1xf32>
    %174 = arith.addf %170, %173 : vector<8x1xf32>
    %175 = math.rsqrt %174 : vector<8x1xf32>
    %176 = vector.broadcast %175 : vector<8x1xf32> to vector<8x32xf32>
    %177 = arith.mulf %172, %176 : vector<8x32xf32>
    %178 = vector.broadcast %20 : vector<1x32xf32> to vector<8x32xf32>
    %179 = arith.mulf %177, %178 : vector<8x32xf32>
    %180 = vector.broadcast %21 : vector<1x32xf32> to vector<8x32xf32>
    %181 = arith.addf %179, %180 : vector<8x32xf32>
    %182 = arith.truncf %181 : vector<8x32xf32> to vector<8x32xbf16>
    %183 = vector.extract_strided_slice %182 {offsets = [0, 0], sizes = [1, 32], strides = [1, 1]} : vector<8x32xbf16> to vector<1x32xbf16>
    %cst_67 = arith.constant dense<0.000000e+00> : vector<1x32xf32>
    %184 = tpu.matmul %183, %15, %cst_67 {dimension_numbers = #tpu.dot_dimension_numbers<[1], [0], [0], [1], [0, 0, 1, 1], [], []>} : vector<1x32xbf16>, vector<32x32xbf16>, vector<1x32xf32> -> vector<1x32xf32>
    %185 = arith.addf %184, %22 : vector<1x32xf32>
    %cst_68 = arith.constant dense<0.000000e+00> : vector<1xf32>
    %186 = vector.multi_reduction <add>, %185, %cst_68 [1] : vector<1x32xf32> to vector<1xf32>
    %187 = vector.shape_cast %186 : vector<1xf32> to vector<1x1xf32>
    %cst_69 = arith.constant 3.200000e+01 : f32
    %188 = vector.broadcast %cst_69 : f32 to vector<1x1xf32>
    %189 = arith.divf %187, %188 : vector<1x1xf32>
    %190 = vector.broadcast %189 : vector<1x1xf32> to vector<1x32xf32>
    %191 = arith.subf %185, %190 : vector<1x32xf32>
    %192 = arith.mulf %191, %191 : vector<1x32xf32>
    %cst_70 = arith.constant dense<0.000000e+00> : vector<1xf32>
    %193 = vector.multi_reduction <add>, %192, %cst_70 [1] : vector<1x32xf32> to vector<1xf32>
    %194 = vector.shape_cast %193 : vector<1xf32> to vector<1x1xf32>
    %cst_71 = arith.constant 3.200000e+01 : f32
    %195 = vector.broadcast %cst_71 : f32 to vector<1x1xf32>
    %196 = arith.divf %194, %195 : vector<1x1xf32>
    %197 = vector.broadcast %189 : vector<1x1xf32> to vector<1x32xf32>
    %198 = arith.subf %185, %197 : vector<1x32xf32>
    %cst_72 = arith.constant 9.99999974E-6 : f32
    %199 = vector.broadcast %cst_72 : f32 to vector<1x1xf32>
    %200 = arith.addf %196, %199 : vector<1x1xf32>
    %201 = math.rsqrt %200 : vector<1x1xf32>
    %202 = vector.broadcast %201 : vector<1x1xf32> to vector<1x32xf32>
    %203 = arith.mulf %198, %202 : vector<1x32xf32>
    %204 = arith.mulf %203, %23 : vector<1x32xf32>
    %205 = arith.addf %204, %24 : vector<1x32xf32>
    %cst_73 = arith.constant dense<0.000000e+00> : vector<2xf32>
    %206 = vector.multi_reduction <add>, %9, %cst_73 [1] : vector<2x8xf32> to vector<2xf32>
    %207 = vector.shape_cast %206 : vector<2xf32> to vector<2x1xf32>
    %cst_74 = arith.constant 9.99999971E-10 : f32
    %208 = vector.broadcast %cst_74 : f32 to vector<2x1xf32>
    %209 = arith.maximumf %207, %208 : vector<2x1xf32>
    %210 = tpu.reciprocal %209 {approx = true} : vector<2x1xf32> -> vector<2x1xf32>
    %211 = arith.truncf %9 : vector<2x8xf32> to vector<2x8xbf16>
    %cst_75 = arith.constant dense<0.000000e+00> : vector<2x32xf32>
    %212 = tpu.matmul %211, %182, %cst_75 {dimension_numbers = #tpu.dot_dimension_numbers<[1], [0], [0], [1], [0, 0, 1, 1], [], []>} : vector<2x8xbf16>, vector<8x32xbf16>, vector<2x32xf32> -> vector<2x32xf32>
    %213 = vector.broadcast %210 : vector<2x1xf32> to vector<2x32xf32>
    %214 = arith.mulf %212, %213 : vector<2x32xf32>
    %c0_76 = arith.constant 0 : index
    %c0_77 = arith.constant 0 : index
    %c0_78 = arith.constant 0 : index
    %215 = vector.load %arg11[%c0_76, %c0_77, %c0_78] : memref<1x1x96xf32, #tpu.memory_space<vmem>>, vector<1x1x32xf32>
    %216 = vector.shape_cast %215 : vector<1x1x32xf32> to vector<1x32xf32>
    %217 = vector.shape_cast %205 : vector<1x32xf32> to vector<1x1x32xf32>
    tpu.vector_store %arg11[%c0_76, %c0_77, %c0_78], %217 {strides = array<i32>} : memref<1x1x96xf32, #tpu.memory_space<vmem>>, vector<1x1x32xf32>,
    %218 = vector.extract_strided_slice %214 {offsets = [0, 0], sizes = [1, 32], strides = [1, 1]} : vector<2x32xf32> to vector<1x32xf32>
    %c0_79 = arith.constant 0 : index
    %c0_80 = arith.constant 0 : index
    %c32 = arith.constant 32 : index
    %219 = vector.load %arg11[%c0_79, %c0_80, %c32] : memref<1x1x96xf32, #tpu.memory_space<vmem>>, vector<1x1x32xf32>
    %220 = vector.shape_cast %219 : vector<1x1x32xf32> to vector<1x32xf32>
    %221 = vector.shape_cast %218 : vector<1x32xf32> to vector<1x1x32xf32>
    tpu.vector_store %arg11[%c0_79, %c0_80, %c32], %221 {strides = array<i32>} : memref<1x1x96xf32, #tpu.memory_space<vmem>>, vector<1x1x32xf32>,
    %222 = vector.extract_strided_slice %214 {offsets = [1, 0], sizes = [1, 32], strides = [1, 1]} : vector<2x32xf32> to vector<1x32xf32>
    %c0_81 = arith.constant 0 : index
    %c0_82 = arith.constant 0 : index
    %c64 = arith.constant 64 : index
    %223 = vector.load %arg11[%c0_81, %c0_82, %c64] : memref<1x1x96xf32, #tpu.memory_space<vmem>>, vector<1x1x32xf32>
    %224 = vector.shape_cast %223 : vector<1x1x32xf32> to vector<1x32xf32>
    %225 = vector.shape_cast %222 : vector<1x32xf32> to vector<1x1x32xf32>
    tpu.vector_store %arg11[%c0_81, %c0_82, %c64], %225 {strides = array<i32>} : memref<1x1x96xf32, #tpu.memory_space<vmem>>, vector<1x1x32xf32>,
    return
  }
  func.func @transform_0(%arg0: i32) -> (i32, i32, i32) {
    %c0_i32 = arith.constant 0 : i32
    %c0_i32_0 = arith.constant 0 : i32
    %c0_i32_1 = arith.constant 0 : i32
    return %arg0, %c0_i32, %c0_i32_0 : i32, i32, i32
  }
  func.func @transform_1(%arg0: i32) -> (i32, i32, i32) {
    %c0_i32 = arith.constant 0 : i32
    %c0_i32_0 = arith.constant 0 : i32
    %c0_i32_1 = arith.constant 0 : i32
    return %arg0, %c0_i32, %c0_i32_0 : i32, i32, i32
  }
  func.func @transform_2(%arg0: i32) -> (i32, i32, i32) {
    %c0_i32 = arith.constant 0 : i32
    %c0_i32_0 = arith.constant 0 : i32
    %c0_i32_1 = arith.constant 0 : i32
    return %arg0, %c0_i32, %c0_i32_0 : i32, i32, i32
  }
  func.func @transform_3(%arg0: i32) -> (i32, i32, i32) {
    %c0_i32 = arith.constant 0 : i32
    %c0_i32_0 = arith.constant 0 : i32
    %c0_i32_1 = arith.constant 0 : i32
    return %arg0, %c0_i32, %c0_i32_0 : i32, i32, i32
  }
  func.func @transform_4(%arg0: i32) -> (i32, i32, i32) {
    %c0_i32 = arith.constant 0 : i32
    %c0_i32_0 = arith.constant 0 : i32
    %c0_i32_1 = arith.constant 0 : i32
    return %arg0, %c0_i32, %c0_i32_0 : i32, i32, i32
  }
  func.func @transform_5(%arg0: i32) -> (i32, i32) {
    %c0_i32 = arith.constant 0 : i32
    %c0_i32_0 = arith.constant 0 : i32
    %c0_i32_1 = arith.constant 0 : i32
    return %c0_i32, %c0_i32_0 : i32, i32
  }
  func.func @transform_6(%arg0: i32) -> (i32, i32) {
    %c0_i32 = arith.constant 0 : i32
    %c0_i32_0 = arith.constant 0 : i32
    %c0_i32_1 = arith.constant 0 : i32
    return %c0_i32, %c0_i32_0 : i32, i32
  }
  func.func @transform_7(%arg0: i32) -> (i32, i32, i32) {
    %c0_i32 = arith.constant 0 : i32
    %c0_i32_0 = arith.constant 0 : i32
    %c0_i32_1 = arith.constant 0 : i32
    %c0_i32_2 = arith.constant 0 : i32
    return %c0_i32, %c0_i32_0, %c0_i32_1 : i32, i32, i32
  }
  func.func @transform_8(%arg0: i32) -> (i32, i32) {
    %c0_i32 = arith.constant 0 : i32
    %c0_i32_0 = arith.constant 0 : i32
    %c0_i32_1 = arith.constant 0 : i32
    return %c0_i32, %c0_i32_0 : i32, i32
  }
  func.func @transform_9(%arg0: i32) -> (i32, i32) {
    %c0_i32 = arith.constant 0 : i32
    %c0_i32_0 = arith.constant 0 : i32
    %c0_i32_1 = arith.constant 0 : i32
    return %c0_i32, %c0_i32_0 : i32, i32
  }
  func.func @transform_10(%arg0: i32) -> (i32, i32, i32) {
    %c0_i32 = arith.constant 0 : i32
    %c0_i32_0 = arith.constant 0 : i32
    %c0_i32_1 = arith.constant 0 : i32
    return %arg0, %c0_i32, %c0_i32_0 : i32, i32, i32
  }
}

</mosaic_0001>

<llo_original>
// kernel: tpu_custom_call.1
$region0: #{tpu_custom_call.1}
  #allocation0 [shape = 'u32[]', space=smem, size = 0x4, offset = 0x4, fixed_abs, tag = 'smem constant byte address 0x4 - core index']
  #allocation1 [shape = 'u32[144,128]{1,0:T(1,128)}', space=vmem, size = 0x12000, scoped, tag = 'internal scratch']
  #allocation2 [shape = 'bf16[8,32]{1,0:T(8,128)(2,1)}', space=vmem, size = 0x800, scoped, tag = 'scratch operand']
  %s0 = inlined_call_operand.vmem [shape: bf16[2,8,32], index: 0, kind: input, shape index: {}]
  %s1 = inlined_call_operand.hbm [shape: bf16[2,4,32], index: 1, kind: input, shape index: {}]
  %s2 = inlined_call_operand.vmem [shape: s32[2,4,1], index: 2, kind: input, shape index: {}]
  %s3 = inlined_call_operand.vmem [shape: s32[2,8,1], index: 3, kind: input, shape index: {}]
  %s4 = inlined_call_operand.hbm [shape: f32[2,2,8], index: 4, kind: input, shape index: {}]
  %s5 = inlined_call_operand.vmem [shape: bf16[64,32], index: 5, kind: input, shape index: {}]
  %s6 = inlined_call_operand.vmem [shape: bf16[32,96], index: 6, kind: input, shape index: {}]
  %s7 = inlined_call_operand.vmem [shape: bf16[2,32,32], index: 7, kind: input, shape index: {}]
  %s8 = inlined_call_operand.vmem [shape: f32[1,96], index: 8, kind: input, shape index: {}]
  %s9 = inlined_call_operand.vmem [shape: f32[8,32], index: 9, kind: input, shape index: {}]
  %s10 = inlined_call_operand.hbm [shape: f32[2,1,96], index: 10, kind: output, shape index: {}]
  %s11 = sld [smem:[#allocation0]]
  $region81: #{tpu_custom_call.1} parent=0
    _
  %s13 = ssub.s32 1, %s11
  %s14 = scalar_select 0, %s13, %s11
  $region1: #{tpu_custom_call.1} parent=0
    #allocation3 [shape = 'u8[2048]{0}', space=vmem, size = 0x800, scoped, tag = 'input window, operand 1']
    #allocation4 [shape = 's32[2]{0}', space=sflag, size = 0x8, scoped, tag = 'scoped memory for tpu_custom_call.1']
    #allocation5 [shape = 's32[2]{0}', space=sflag, size = 0x8, scoped, tag = 'scoped memory for tpu_custom_call.1']
    #allocation6 [shape = 'u8[2048]{0}', space=vmem, size = 0x800, scoped, tag = 'input window, operand 4']
    #allocation7 [shape = 's32[2]{0}', space=sflag, size = 0x8, scoped, tag = 'scoped memory for tpu_custom_call.1']
    #allocation8 [shape = 'u8[1024]{0}', space=vmem, size = 0x400, scoped, tag = 'output window, operand 0']
    %15 = vsyncpa [#allocation4], 0
    %s16 = scalar_lea.sflag [#allocation4], 1
    %17 = vsyncpa %s16, 0
    %18 = vsyncpa [#allocation7], 0
    %s19 = scalar_lea.sflag [#allocation7], 1
    %20 = vsyncpa %s19, 0
    %21 = vsyncpa [#allocation5], 0
    %s22 = scalar_lea.sflag [#allocation5], 1
    %23 = vsyncpa %s22, 0
    loop: start=0, step=1, limit=4
    $region2: #{tpu_custom_call.1} parent=1 // loop_pre_header
      _
    $region3: #{tpu_custom_call.1} parent=1 // loop_header
      %s25 = sphi 0, %s29
      %p26 = scmp.ge.s32.totalorder %s25, 4
      %s35 = sphi 0, %s37
      %s38 = sphi 0, %s35
      %s39 = sphi 0, %s38
      %s55 = sphi 0, %s39
      %s61 = sphi 0, %s63
      %s64 = sphi 0, %s61
      %s65 = sphi 0, %s64
      %s81 = sphi 0, %s65
      %s87 = sphi 0, %s89
      %s90 = sphi 0, %s87
      %s91 = sphi 0, %s90
      %s107 = sphi 0, %s91
      %s113 = sphi 0, %s115
      %s116 = sphi 0, %s113
      %s117 = sphi 0, %s116
      %s133 = sphi 0, %s117
      %s139 = sphi 0, %s141
      %s142 = sphi 0, %s139
      %s143 = sphi 0, %s142
      %s159 = sphi 0, %s143
      %s163 = sphi 0, %s163
      %s165 = sphi 0, %s163
      %s166 = sphi 0, %s165
      %s180 = sphi 0, %s166
      %s184 = sphi 0, %s184
      %s186 = sphi 0, %s184
      %s187 = sphi 0, %s186
      %s201 = sphi 0, %s187
      %s205 = sphi 0, %s205
      %s207 = sphi 0, %s205
      %s208 = sphi 0, %s207
      %s222 = sphi 0, %s208
      %s226 = sphi 0, %s226
      %s228 = sphi 0, %s226
      %s229 = sphi 0, %s228
      %s243 = sphi 0, %s229
      %s247 = sphi 0, %s247
      %s249 = sphi 0, %s247
      %s250 = sphi 0, %s249
      %s264 = sphi 0, %s250
      %s270 = sphi 0, %s272
      %s273 = sphi 0, %s270
      %s274 = sphi 0, %s273
      %s290 = sphi 0, %s274
    $region4: #{tpu_custom_call.1} parent=1 // loop_header_branch
      %28 = sbr.rel (%p26) target = $region8
    $region5: #{tpu_custom_call.1} parent=1 // loop_body
      %s30 = ssub.s32 %s25, 1
      %s31 = ssub.s32 %s25, 2
      %s32 = sadd.s32 %s25, 1
      %s33 = ssub.s32 %s25, %s32
      %p34 = scmp.eq.s32.totalorder %s33, 0
      %s36 = sadd.s32 %s35, 1
      %s37 = scalar_select %p34, %s35, %s36
      %p40 = pneg %p34
      %p41 = scmp.eq.s32.totalorder %s25, 1
      %p42 = por %p40, %p41
      %p43 = scmp.ne.s32.totalorder %s35, %s38
      %p44 = scmp.eq.s32.totalorder %s25, 0
      %p45 = por %p43, %p44
      %p46 = scmp.ne.s32.totalorder %s35, %s38
      %p47 = scmp.eq.s32.totalorder %s30, 1
      %p48 = por %p46, %p47
      %p49 = scmp.ne.s32.totalorder %s38, %s39
      %p50 = scmp.eq.s32.totalorder %s30, 0
      %p51 = por %p49, %p50
      %p52 = scmp.ne.s32.totalorder %s38, %s39
      %p53 = scmp.eq.s32.totalorder %s31, 1
      %p54 = por %p52, %p53
      %p56 = scmp.ne.s32.totalorder %s39, %s55
      %p57 = scmp.eq.s32.totalorder %s31, 0
      %p58 = por %p56, %p57
      %s59 = ssub.s32 %s25, %s32
      %p60 = scmp.eq.s32.totalorder %s59, 0
      %s62 = sadd.s32 %s61, 1
      %s63 = scalar_select %p60, %s61, %s62
      %p66 = pneg %p60
      %p67 = scmp.eq.s32.totalorder %s25, 1
      %p68 = por %p66, %p67
      %p69 = scmp.ne.s32.totalorder %s61, %s64
      %p70 = scmp.eq.s32.totalorder %s25, 0
      %p71 = por %p69, %p70
      %p72 = scmp.ne.s32.totalorder %s61, %s64
      %p73 = scmp.eq.s32.totalorder %s30, 1
      %p74 = por %p72, %p73
      %p75 = scmp.ne.s32.totalorder %s64, %s65
      %p76 = scmp.eq.s32.totalorder %s30, 0
      %p77 = por %p75, %p76
      %p78 = scmp.ne.s32.totalorder %s64, %s65
      %p79 = scmp.eq.s32.totalorder %s31, 1
      %p80 = por %p78, %p79
      %p82 = scmp.ne.s32.totalorder %s65, %s81
      %p83 = scmp.eq.s32.totalorder %s31, 0
      %p84 = por %p82, %p83
      %s85 = ssub.s32 %s25, %s32
      %p86 = scmp.eq.s32.totalorder %s85, 0
      %s88 = sadd.s32 %s87, 1
      %s89 = scalar_select %p86, %s87, %s88
      %p92 = pneg %p86
      %p93 = scmp.eq.s32.totalorder %s25, 1
      %p94 = por %p92, %p93
      %p95 = scmp.ne.s32.totalorder %s87, %s90
      %p96 = scmp.eq.s32.totalorder %s25, 0
      %p97 = por %p95, %p96
      %p98 = scmp.ne.s32.totalorder %s87, %s90
      %p99 = scmp.eq.s32.totalorder %s30, 1
      %p100 = por %p98, %p99
      %p101 = scmp.ne.s32.totalorder %s90, %s91
      %p102 = scmp.eq.s32.totalorder %s30, 0
      %p103 = por %p101, %p102
      %p104 = scmp.ne.s32.totalorder %s90, %s91
      %p105 = scmp.eq.s32.totalorder %s31, 1
      %p106 = por %p104, %p105
      %p108 = scmp.ne.s32.totalorder %s91, %s107
      %p109 = scmp.eq.s32.totalorder %s31, 0
      %p110 = por %p108, %p109
      %s111 = ssub.s32 %s25, %s32
      %p112 = scmp.eq.s32.totalorder %s111, 0
      %s114 = sadd.s32 %s113, 1
      %s115 = scalar_select %p112, %s113, %s114
      %p118 = pneg %p112
      %p119 = scmp.eq.s32.totalorder %s25, 1
      %p120 = por %p118, %p119
      %p121 = scmp.ne.s32.totalorder %s113, %s116
      %p122 = scmp.eq.s32.totalorder %s25, 0
      %p123 = por %p121, %p122
      %p124 = scmp.ne.s32.totalorder %s113, %s116
      %p125 = scmp.eq.s32.totalorder %s30, 1
      %p126 = por %p124, %p125
      %p127 = scmp.ne.s32.totalorder %s116, %s117
      %p128 = scmp.eq.s32.totalorder %s30, 0
      %p129 = por %p127, %p128
      %p130 = scmp.ne.s32.totalorder %s116, %s117
      %p131 = scmp.eq.s32.totalorder %s31, 1
      %p132 = por %p130, %p131
      %p134 = scmp.ne.s32.totalorder %s117, %s133
      %p135 = scmp.eq.s32.totalorder %s31, 0
      %p136 = por %p134, %p135
      %s137 = ssub.s32 %s25, %s32
      %p138 = scmp.eq.s32.totalorder %s137, 0
      %s140 = sadd.s32 %s139, 1
      %s141 = scalar_select %p138, %s139, %s140
      %p144 = pneg %p138
      %p145 = scmp.eq.s32.totalorder %s25, 1
      %p146 = por %p144, %p145
      %p147 = scmp.ne.s32.totalorder %s139, %s142
      %p148 = scmp.eq.s32.totalorder %s25, 0
      %p149 = por %p147, %p148
      %p150 = scmp.ne.s32.totalorder %s139, %s142
      %p151 = scmp.eq.s32.totalorder %s30, 1
      %p152 = por %p150, %p151
      %p153 = scmp.ne.s32.totalorder %s142, %s143
      %p154 = scmp.eq.s32.totalorder %s30, 0
      %p155 = por %p153, %p154
      %p156 = scmp.ne.s32.totalorder %s142, %s143
      %p157 = scmp.eq.s32.totalorder %s31, 1
      %p158 = por %p156, %p157
      %p160 = scmp.ne.s32.totalorder %s143, %s159
      %p161 = scmp.eq.s32.totalorder %s31, 0
      %p162 = por %p160, %p161
      %s164 = sadd.s32 %s163, 1
      %p167 = scmp.eq.s32.totalorder %s25, 1
      %p168 = scmp.ne.s32.totalorder %s163, %s165
      %p169 = scmp.eq.s32.totalorder %s25, 0
      %p170 = por %p168, %p169
      %p171 = scmp.ne.s32.totalorder %s163, %s165
      %p172 = scmp.eq.s32.totalorder %s30, 1
      %p173 = por %p171, %p172
      %p174 = scmp.ne.s32.totalorder %s165, %s166
      %p175 = scmp.eq.s32.totalorder %s30, 0
      %p176 = por %p174, %p175
      %p177 = scmp.ne.s32.totalorder %s165, %s166
      %p178 = scmp.eq.s32.totalorder %s31, 1
      %p179 = por %p177, %p178
      %p181 = scmp.ne.s32.totalorder %s166, %s180
      %p182 = scmp.eq.s32.totalorder %s31, 0
      %p183 = por %p181, %p182
      %s185 = sadd.s32 %s184, 1
      %p188 = scmp.eq.s32.totalorder %s25, 1
      %p189 = scmp.ne.s32.totalorder %s184, %s186
      %p190 = scmp.eq.s32.totalorder %s25, 0
      %p191 = por %p189, %p190
      %p192 = scmp.ne.s32.totalorder %s184, %s186
      %p193 = scmp.eq.s32.totalorder %s30, 1
      %p194 = por %p192, %p193
      %p195 = scmp.ne.s32.totalorder %s186, %s187
      %p196 = scmp.eq.s32.totalorder %s30, 0
      %p197 = por %p195, %p196
      %p198 = scmp.ne.s32.totalorder %s186, %s187
      %p199 = scmp.eq.s32.totalorder %s31, 1
      %p200 = por %p198, %p199
      %p202 = scmp.ne.s32.totalorder %s187, %s201
      %p203 = scmp.eq.s32.totalorder %s31, 0
      %p204 = por %p202, %p203
      %s206 = sadd.s32 %s205, 1
      %p209 = scmp.eq.s32.totalorder %s25, 1
      %p210 = scmp.ne.s32.totalorder %s205, %s207
      %p211 = scmp.eq.s32.totalorder %s25, 0
      %p212 = por %p210, %p211
      %p213 = scmp.ne.s32.totalorder %s205, %s207
      %p214 = scmp.eq.s32.totalorder %s30, 1
      %p215 = por %p213, %p214
      %p216 = scmp.ne.s32.totalorder %s207, %s208
      %p217 = scmp.eq.s32.totalorder %s30, 0
      %p218 = por %p216, %p217
      %p219 = scmp.ne.s32.totalorder %s207, %s208
      %p220 = scmp.eq.s32.totalorder %s31, 1
      %p221 = por %p219, %p220
      %p223 = scmp.ne.s32.totalorder %s208, %s222
      %p224 = scmp.eq.s32.totalorder %s31, 0
      %p225 = por %p223, %p224
      %s227 = sadd.s32 %s226, 1
      %p230 = scmp.eq.s32.totalorder %s25, 1
      %p231 = scmp.ne.s32.totalorder %s226, %s228
      %p232 = scmp.eq.s32.totalorder %s25, 0
      %p233 = por %p231, %p232
      %p234 = scmp.ne.s32.totalorder %s226, %s228
      %p235 = scmp.eq.s32.totalorder %s30, 1
      %p236 = por %p234, %p235
      %p237 = scmp.ne.s32.totalorder %s228, %s229
      %p238 = scmp.eq.s32.totalorder %s30, 0
      %p239 = por %p237, %p238
      %p240 = scmp.ne.s32.totalorder %s228, %s229
      %p241 = scmp.eq.s32.totalorder %s31, 1
      %p242 = por %p240, %p241
      %p244 = scmp.ne.s32.totalorder %s229, %s243
      %p245 = scmp.eq.s32.totalorder %s31, 0
      %p246 = por %p244, %p245
      %s248 = sadd.s32 %s247, 1
      %p251 = scmp.eq.s32.totalorder %s25, 1
      %p252 = scmp.ne.s32.totalorder %s247, %s249
      %p253 = scmp.eq.s32.totalorder %s25, 0
      %p254 = por %p252, %p253
      %p255 = scmp.ne.s32.totalorder %s247, %s249
      %p256 = scmp.eq.s32.totalorder %s30, 1
      %p257 = por %p255, %p256
      %p258 = scmp.ne.s32.totalorder %s249, %s250
      %p259 = scmp.eq.s32.totalorder %s30, 0
      %p260 = por %p258, %p259
      %p261 = scmp.ne.s32.totalorder %s249, %s250
      %p262 = scmp.eq.s32.totalorder %s31, 1
      %p263 = por %p261, %p262
      %p265 = scmp.ne.s32.totalorder %s250, %s264
      %p266 = scmp.eq.s32.totalorder %s31, 0
      %p267 = por %p265, %p266
      %s268 = ssub.s32 %s25, %s32
      %p269 = scmp.eq.s32.totalorder %s268, 0
      %s271 = sadd.s32 %s270, 1
      %s272 = scalar_select %p269, %s270, %s271
      %p275 = pneg %p269
      %p276 = scmp.eq.s32.totalorder %s25, 1
      %p277 = por %p275, %p276
      %p278 = scmp.ne.s32.totalorder %s270, %s273
      %p279 = scmp.eq.s32.totalorder %s25, 0
      %p280 = por %p278, %p279
      %p281 = scmp.ne.s32.totalorder %s270, %s273
      %p282 = scmp.eq.s32.totalorder %s30, 1
      %p283 = por %p281, %p282
      %p284 = scmp.ne.s32.totalorder %s273, %s274
      %p285 = scmp.eq.s32.totalorder %s30, 0
      %p286 = por %p284, %p285
      %p287 = scmp.ne.s32.totalorder %s273, %s274
      %p288 = scmp.eq.s32.totalorder %s31, 1
      %p289 = por %p287, %p288
      %p291 = scmp.ne.s32.totalorder %s274, %s290
      %p292 = scmp.eq.s32.totalorder %s31, 0
      %p293 = por %p291, %p292
      %p294 = scmp.le.s32.totalorder 1, %s25
      %p295 = scmp.lt.s32.totalorder %s25, 3
      %p296 = pnand %p294, %p295
      %p297 = pneg %p296
      // Predicated region
      $region9: #{tpu_custom_call.1} parent=5 // pred_check
        _
      $region10: #{tpu_custom_call.1} parent=5 // pred_check_branch
        %299 = sbr.rel (%p296) target = $region12
      $region11: #{tpu_custom_call.1} parent=5 // pred_region
        %s300 = ssub.s32 %s25, 1
        // Predicated region
        $region13: #{tpu_custom_call.1} parent=11 // pred_check
          %p301 = pneg %p176
        $region14: #{tpu_custom_call.1} parent=11 // pred_check_branch
          %303 = sbr.rel (%p301) target = $region16
        $region15: #{tpu_custom_call.1} parent=11 // pred_region
          _
        $region16: #{tpu_custom_call.1} parent=11 // pred_fallthru
          _
        // Predicated region
        $region17: #{tpu_custom_call.1} parent=11 // pred_check
          %p304 = pneg %p197
        $region18: #{tpu_custom_call.1} parent=11 // pred_check_branch
          %306 = sbr.rel (%p304) target = $region20
        $region19: #{tpu_custom_call.1} parent=11 // pred_region
          _
        $region20: #{tpu_custom_call.1} parent=11 // pred_fallthru
          _
        // Predicated region
        $region21: #{tpu_custom_call.1} parent=11 // pred_check
          %p307 = pneg %p218
        $region22: #{tpu_custom_call.1} parent=11 // pred_check_branch
          %309 = sbr.rel (%p307) target = $region24
        $region23: #{tpu_custom_call.1} parent=11 // pred_region
          _
        $region24: #{tpu_custom_call.1} parent=11 // pred_fallthru
          _
        // Predicated region
        $region25: #{tpu_custom_call.1} parent=11 // pred_check
          %p310 = pneg %p239
        $region26: #{tpu_custom_call.1} parent=11 // pred_check_branch
          %312 = sbr.rel (%p310) target = $region28
        $region27: #{tpu_custom_call.1} parent=11 // pred_region
          _
        $region28: #{tpu_custom_call.1} parent=11 // pred_fallthru
          _
        // Predicated region
        $region29: #{tpu_custom_call.1} parent=11 // pred_check
          %p313 = pneg %p260
        $region30: #{tpu_custom_call.1} parent=11 // pred_check_branch
          %315 = sbr.rel (%p313) target = $region32
        $region31: #{tpu_custom_call.1} parent=11 // pred_region
          _
        $region32: #{tpu_custom_call.1} parent=11 // pred_fallthru
          _
      $region12: #{tpu_custom_call.1} parent=5 // pred_fallthru
        _
      %p316 = scmp.lt.s32.totalorder %s25, 2
      // Predicated region
      $region33: #{tpu_custom_call.1} parent=5 // pred_check
        %p317 = pneg %p316
      $region34: #{tpu_custom_call.1} parent=5 // pred_check_branch
        %319 = sbr.rel (%p317) target = $region36
      $region35: #{tpu_custom_call.1} parent=5 // pred_region
        // Predicated region
        $region37: #{tpu_custom_call.1} parent=35 // pred_check
          %p320 = pneg %p45
        $region38: #{tpu_custom_call.1} parent=35 // pred_check_branch
          %322 = sbr.rel (%p320) target = $region40
        $region39: #{tpu_custom_call.1} parent=35 // pred_region
          %p323 = scmp.lt.s32.totalorder %s25, 1
          %s324 = scalar_select %p323, %s25, 1
          %s325 = smul.addr %s324, 4
          %s326 = scalar_lea.vmem %s0, %s325
        $region40: #{tpu_custom_call.1} parent=35 // pred_fallthru
          _
        // Predicated region
        $region41: #{tpu_custom_call.1} parent=35 // pred_check
          %p327 = pneg %p71
        $region42: #{tpu_custom_call.1} parent=35 // pred_check_branch
          %329 = sbr.rel (%p327) target = $region44
        $region43: #{tpu_custom_call.1} parent=35 // pred_region
          %s330 = sand.u32 %s61, 1
          %s331 = scalar_lea.sflag [#allocation4], %s330
          %s332 = sand.u32 %s61, 1
          %s333 = smul.addr %s332, 2
          %s334 = scalar_lea.vmem [#allocation3], %s333
          %s336 = ssub.s32 32, 32
          %337 = vsyncadd %s331, %s336
          %s338 = smul.addr %s25, 32
          %s339 = scalar_lea.hbm %s1, %s338
          %s341 = sshll.u32 %s334, 4
          %s342 = int_to_ptr.vmem [resolvable:$true] %s341
          %344 = dma.hbm_to_vmem [thread:$0]  %s339, 32, %s342, %s331
        $region44: #{tpu_custom_call.1} parent=35 // pred_fallthru
          _
        // Predicated region
        $region45: #{tpu_custom_call.1} parent=35 // pred_check
          %p345 = pneg %p97
        $region46: #{tpu_custom_call.1} parent=35 // pred_check_branch
          %347 = sbr.rel (%p345) target = $region48
        $region47: #{tpu_custom_call.1} parent=35 // pred_region
          %p348 = scmp.lt.s32.totalorder %s25, 1
          %s349 = scalar_select %p348, %s25, 1
          %s350 = smul.addr %s349, 4
          %s351 = scalar_lea.vmem %s2, %s350
        $region48: #{tpu_custom_call.1} parent=35 // pred_fallthru
          _
        // Predicated region
        $region49: #{tpu_custom_call.1} parent=35 // pred_check
          %p352 = pneg %p123
        $region50: #{tpu_custom_call.1} parent=35 // pred_check_branch
          %354 = sbr.rel (%p352) target = $region52
        $region51: #{tpu_custom_call.1} parent=35 // pred_region
          %p355 = scmp.lt.s32.totalorder %s25, 1
          %s356 = scalar_select %p355, %s25, 1
          %s357 = smul.addr %s356, 8
          %s358 = scalar_lea.vmem %s3, %s357
        $region52: #{tpu_custom_call.1} parent=35 // pred_fallthru
          _
        // Predicated region
        $region53: #{tpu_custom_call.1} parent=35 // pred_check
          %p359 = pneg %p149
        $region54: #{tpu_custom_call.1} parent=35 // pred_check_branch
          %361 = sbr.rel (%p359) target = $region56
        $region55: #{tpu_custom_call.1} parent=35 // pred_region
          %s362 = sand.u32 %s139, 1
          %s363 = scalar_lea.sflag [#allocation7], %s362
          %s364 = sand.u32 %s139, 1
          %s365 = smul.addr %s364, 2
          %s366 = scalar_lea.vmem [#allocation6], %s365
          %s368 = ssub.s32 32, 32
          %369 = vsyncadd %s363, %s368
          %s370 = smul.addr %s25, 32
          %s371 = scalar_lea.hbm %s4, %s370
          %s373 = sshll.u32 %s366, 4
          %s374 = int_to_ptr.vmem [resolvable:$true] %s373
          %376 = dma.hbm_to_vmem [thread:$0]  %s371, 32, %s374, %s363
        $region56: #{tpu_custom_call.1} parent=35 // pred_fallthru
          _
      $region36: #{tpu_custom_call.1} parent=5 // pred_fallthru
        _
      %p377 = scmp.le.s32.totalorder 1, %s25
      %p378 = scmp.lt.s32.totalorder %s25, 3
      %p379 = pnand %p377, %p378
      %p380 = pneg %p379
      // Predicated region
      $region57: #{tpu_custom_call.1} parent=5 // pred_check
        _
      $region58: #{tpu_custom_call.1} parent=5 // pred_check_branch
        %382 = sbr.rel (%p379) target = $region60
      $region59: #{tpu_custom_call.1} parent=5 // pred_region
        %s383 = ssub.s32 %s25, 1
        %s384 = sand.u32 %s64, 1
        %s385 = scalar_lea.sflag [#allocation4], %s384
        %s386 = sand.u32 %s64, 1
        %s387 = smul.addr %s386, 2
        %s388 = scalar_lea.vmem [#allocation3], %s387
        // Predicated region
        $region61: #{tpu_custom_call.1} parent=59 // pred_check
          %p389 = pneg %p77
        $region62: #{tpu_custom_call.1} parent=59 // pred_check_branch
          %391 = sbr.rel (%p389) target = $region64
        $region63: #{tpu_custom_call.1} parent=59 // pred_region
          %392 = dma.done %s385, 32
        $region64: #{tpu_custom_call.1} parent=59 // pred_fallthru
          _
        %s393 = sand.u32 %s142, 1
        %s394 = scalar_lea.sflag [#allocation7], %s393
        %s395 = sand.u32 %s142, 1
        %s396 = smul.addr %s395, 2
        %s397 = scalar_lea.vmem [#allocation6], %s396
        // Predicated region
        $region65: #{tpu_custom_call.1} parent=59 // pred_check
          %p398 = pneg %p155
        $region66: #{tpu_custom_call.1} parent=59 // pred_check_branch
          %400 = sbr.rel (%p398) target = $region68
        $region67: #{tpu_custom_call.1} parent=59 // pred_region
          %401 = dma.done %s394, 32
        $region68: #{tpu_custom_call.1} parent=59 // pred_fallthru
          _
        %p402 = scmp.lt.s32.totalorder %s30, 1
        %s403 = scalar_select %p402, %s30, 1
        %s404 = smul.addr %s403, 4
        %s405 = scalar_lea.vmem %s0, %s404
        %p406 = pneg %p51
        %p407 = pneg %p48
        %s408 = sand.u32 %s64, 1
        %s409 = scalar_lea.sflag [#allocation4], %s408
        %s410 = sand.u32 %s64, 1
        %s411 = smul.addr %s410, 2
        %s412 = scalar_lea.vmem [#allocation3], %s411
        %p413 = pneg %p77
        %p414 = pneg %p74
        %p415 = scmp.lt.s32.totalorder %s30, 1
        %s416 = scalar_select %p415, %s30, 1
        %s417 = smul.addr %s416, 4
        %s418 = scalar_lea.vmem %s2, %s417
        %p419 = pneg %p103
        %p420 = pneg %p100
        %p421 = scmp.lt.s32.totalorder %s30, 1
        %s422 = scalar_select %p421, %s30, 1
        %s423 = smul.addr %s422, 8
        %s424 = scalar_lea.vmem %s3, %s423
        %p425 = pneg %p129
        %p426 = pneg %p126
        %s427 = sand.u32 %s142, 1
        %s428 = scalar_lea.sflag [#allocation7], %s427
        %s429 = sand.u32 %s142, 1
        %s430 = smul.addr %s429, 2
        %s431 = scalar_lea.vmem [#allocation6], %s430
        %p432 = pneg %p155
        %p433 = pneg %p152
        %p434 = pneg %p176
        %p435 = pneg %p173
        %p436 = pneg %p197
        %p437 = pneg %p194
        %p438 = pneg %p218
        %p439 = pneg %p215
        %p440 = pneg %p239
        %p441 = pneg %p236
        %p442 = pneg %p260
        %p443 = pneg %p257
        %p444 = pneg %p286
        %p445 = pneg %p283
        %s446 = sand.u32 %s273, 1
        %s447 = scalar_lea.sflag [#allocation5], %s446
        %s448 = sand.u32 %s273, 1
        %s449 = scalar_lea.vmem [#allocation8], %s448
        %p450 = scmp.lt.s32.totalorder %s30, 1
        %s451 = scalar_select %p450, %s30, 1
        %s452 = smul.addr %s451, 4
        %s453 = scalar_lea.vmem %s0, %s452
        %p454 = scmp.lt.s32.totalorder %s30, 1
        %s455 = scalar_select %p454, %s30, 1
        %s456 = smul.addr %s455, 4
        %s457 = scalar_lea.vmem %s2, %s456
        %p458 = scmp.lt.s32.totalorder %s30, 1
        %s459 = scalar_select %p458, %s30, 1
        %s460 = smul.addr %s459, 8
        %s461 = scalar_lea.vmem %s3, %s460
        %v463 = vld [vmem:[%s453] sm:$0xf]
        %v464 = vld [vmem:[%s388] sm:$0x3]
        %v465 = vld [vmem:[%s457] sm:$0xf]
        %v466 = vld [vmem:[%s461] sm:$0xff]
        %v467 = vld [vmem:[%s397] sm:$0x3]
        %v468 = vld [vmem:[%s5] sm:$0xf]
        %v469 = vld [vmem:[%s5 + $0x4] sm:$0xf]
        %v470 = vld [vmem:[%s5 + $0x8] sm:$0xf]
        %v471 = vld [vmem:[%s5 + $0xc] sm:$0xf]
        %v472 = vld [vmem:[%s5 + $0x10] sm:$0xf]
        %v473 = vld [vmem:[%s5 + $0x14] sm:$0xf]
        %v474 = vld [vmem:[%s5 + $0x18] sm:$0xf]
        %v475 = vld [vmem:[%s5 + $0x1c] sm:$0xf]
        %v476 = vld [vmem:[%s6] sm:$0xf]
        %v477 = vld [vmem:[%s6 + $0x4] sm:$0xf]
        %v478 = vld [vmem:[%s6 + $0x8] sm:$0xf]
        %v479 = vld [vmem:[%s6 + $0xc] sm:$0xf]
        %v480 = vld [vmem:[%s7] sm:$0xf]
        %v481 = vld [vmem:[%s7 + $0x4] sm:$0xf]
        %v482 = vld [vmem:[%s7 + $0x8] sm:$0xf]
        %v483 = vld [vmem:[%s7 + $0xc] sm:$0xf]
        %s484 = scalar_lea.vmem %s7, 16
        %v485 = vld [vmem:[%s484] sm:$0xf]
        %v486 = vld [vmem:[%s484 + $0x4] sm:$0xf]
        %v487 = vld [vmem:[%s484 + $0x8] sm:$0xf]
        %v488 = vld [vmem:[%s484 + $0xc] sm:$0xf]
        %v489 = vld [vmem:[%s8] sm:$0x1]
        %v490 = vld [vmem:[%s9] sm:$0xff]
        %v491 = vlaneseq
        %v492 = vand.u32 %v491, 127
        %v493 = vadd.s32 %v492, 1
        %494 = vset.pattern.permute.xlu0 0
        %495 = vperm.xlu0 %494, %v466
        %v496 = vpop.permute.xlu0 %495
        %vm497 = vcmp.eq.s32.totalorder %v496, %v493
        %v498 = vsel %vm497, 1, 0
        %v499 = vcvt.s32.f32 %v498
        %v500 = vpack.c.bf16 %v499, %v499
        %vm501 = vcmp.eq.s32.totalorder %v465, 1
        %v502 = vsel %vm501, 1, 0
        %v503 = vcvt.s32.f32 %v502
        %v504 = vpack.c.bf16 %v503, %v503
        %506 = vset.pattern.permute.xlu0 0
        %507 = vperm.xlu0 %506, %v504
        %v508 = vpop.permute.xlu0 %507
        %v510 = vmul.bf16 %v464, %v508
        %vm511 = vcmask 31744
        %v513 = vsel %vm511, %v500, 0
        %vm515 = vcmask 1041408
        %v517 = vsel %vm515, %v510, 0
        %519 = vmatprep.subr.bf16.mxu0 0
        %520 = vmatpush1.bf16.msra.mxu0 0
        %521 = vmatprep.subr.bf16.mxu0 0
        %522 = vmatpush1.bf16.msra.mxu0 0
        %523 = vmatprep.subr.bf16.mxu0 0
        %524 = vmatpush1.bf16.msra.mxu0 0
        %525 = vmatprep.subr.bf16.mxu0 0
        %526 = vmatpush1.bf16.msra.mxu0 0
        %527 = vmatprep.subr.bf16.mxu0 0
        %528 = vmatpush1.bf16.msra.mxu0 0
        %529 = vmatprep.subr.bf16.mxu0 0
        %530 = vmatpush1.bf16.msra.mxu0 0
        %531 = vmatprep.subr.bf16.mxu0 0
        %532 = vmatpush1.bf16.msra.mxu0 0
        %533 = vmatprep.subr.bf16.mxu0 0
        %534 = vmatpush1.bf16.msra.mxu0 %v517
        %535 = vmatprep.subr.bf16.mxu0 0
        %536 = vmatpush2.bf16.msra.mxu0 0
        %537 = vmatprep.subr.bf16.mxu0 0
        %538 = vmatpush2.bf16.msra.mxu0 0
        %539 = vmatprep.subr.bf16.mxu0 0
        %540 = vmatpush2.bf16.msra.mxu0 0
        %541 = vmatprep.subr.bf16.mxu0 0
        %542 = vmatpush2.bf16.msra.mxu0 0
        %543 = vmatprep.subr.bf16.mxu0 0
        %544 = vmatpush2.bf16.msra.mxu0 0
        %545 = vmatprep.subr.bf16.mxu0 0
        %546 = vmatpush2.bf16.msra.mxu0 0
        %547 = vmatprep.subr.bf16.mxu0 0
        %548 = vmatpush2.bf16.msra.mxu0 0
        %549 = vmatprep.subr.bf16.mxu0 0
        %550 = vmatpush2.bf16.msra.mxu0 0
        %551 = vmatprep.mubr.bf16.mxu0 0
        %552 = vmatmul.mubr.bf16.gmra.mxu0 %v513
        %v553 = vpop.f32.mrf.mxu0
        %v554 = vadd.f32 0.0, %v553
        %v555 = vpop.f32.mrf.mxu0
        %v556 = vpop.f32.mrf.mxu0
        %v557 = vpop.f32.mrf.mxu0
        %558 = vdwg.mxu0
        %v559 = vpack.c.bf16 %v554, %v554
        %561 = vrot.lane.b32.xlu0 %v559, 32
        %v562 = vpop.permute.xlu0 %561
        %vm563 = vcmask 261120
        %v566 = vsel %vm563, %v463, %v562
        %v567 = vlaneseq
        %v568 = vshrl.u32 %v567, 7
        %v569 = vsub.s32 0, %v568
        %v570 = vrot.slane %v490, %v569
        %v579 = vunpack.c.l.b16 %v468
        %v580 = vunpack.c.l.b16 %v469
        %v581 = vunpack.c.l.b16 %v470
        %v582 = vunpack.c.l.b16 %v471
        %v583 = vunpack.c.l.b16 %v472
        %v584 = vunpack.c.l.b16 %v473
        %v585 = vunpack.c.l.b16 %v474
        %v586 = vunpack.c.l.b16 %v475
        %v587 = vpack.c.b16 %v580, %v579
        %v588 = vpack.c.b16 %v582, %v581
        %v589 = vpack.c.b16 %v584, %v583
        %v590 = vpack.c.b16 %v586, %v585
        %vm595 = vcmask 523264
        %v596 = vsel %vm595, %v566, 0
        %598 = vmatprep.subr.bf16.mxu0 0
        %599 = vmatpush1.bf16.msra.mxu0 0
        %600 = vmatprep.subr.bf16.mxu0 0
        %601 = vmatpush1.bf16.msra.mxu0 0
        %602 = vmatprep.subr.bf16.mxu0 0
        %603 = vmatpush1.bf16.msra.mxu0 0
        %604 = vmatprep.subr.bf16.mxu0 0
        %605 = vmatpush1.bf16.msra.mxu0 0
        %606 = vmatprep.subr.bf16.mxu0 0
        %607 = vmatpush1.bf16.msra.mxu0 %v590
        %608 = vmatprep.subr.bf16.mxu0 0
        %609 = vmatpush1.bf16.msra.mxu0 %v589
        %610 = vmatprep.subr.bf16.mxu0 0
        %611 = vmatpush1.bf16.msra.mxu0 %v588
        %612 = vmatprep.subr.bf16.mxu0 0
        %613 = vmatpush1.bf16.msra.mxu0 %v587
        %614 = vmatprep.subr.bf16.mxu0 0
        %615 = vmatpush2.bf16.msra.mxu0 0
        %616 = vmatprep.subr.bf16.mxu0 0
        %617 = vmatpush2.bf16.msra.mxu0 0
        %618 = vmatprep.subr.bf16.mxu0 0
        %619 = vmatpush2.bf16.msra.mxu0 0
        %620 = vmatprep.subr.bf16.mxu0 0
        %621 = vmatpush2.bf16.msra.mxu0 0
        %622 = vmatprep.subr.bf16.mxu0 0
        %623 = vmatpush2.bf16.msra.mxu0 0
        %624 = vmatprep.subr.bf16.mxu0 0
        %625 = vmatpush2.bf16.msra.mxu0 0
        %626 = vmatprep.subr.bf16.mxu0 0
        %627 = vmatpush2.bf16.msra.mxu0 0
        %628 = vmatprep.subr.bf16.mxu0 0
        %629 = vmatpush2.bf16.msra.mxu0 0
        %630 = vmatprep.mubr.bf16.mxu0 0
        %631 = vmatmul.mubr.bf16.gmra.mxu0 %v596
        %v632 = vpop.f32.mrf.mxu0
        %v633 = vadd.f32 %v570, %v632
        %v634 = vpop.f32.mrf.mxu0
        %v635 = vpop.f32.mrf.mxu0
        %v636 = vpop.f32.mrf.mxu0
        %637 = vdwg.mxu0
        %v638 = vmul.f32 %v633, 0.5
        %v639 = vmul.f32 %v633, 0.044715
        %v640 = vmul.f32 %v639, %v633
        %v641 = vmul.f32 %v640, %v633
        %v642 = vadd.f32 %v633, %v641
        %v643 = vmul.f32 %v642, 0.7978846
        %v644 = vtanh.pop %v643
        %v645 = vadd.f32 %v644, 1.0
        %v646 = vmul.f32 %v638, %v645
        %v647 = vpack.c.bf16 %v646, %v646
        %v649 = vlaneseq
        %v650 = vshrl.u32 %v649, 7
        %v651 = vsub.s32 0, %v650
        %v652 = vrot.slane %v489, %v651
        %v658 = vunpack.c.l.b16 %v476
        %v659 = vunpack.c.l.b16 %v477
        %v660 = vunpack.c.l.b16 %v478
        %v661 = vunpack.c.l.b16 %v479
        %v662 = vpack.c.b16 %v659, %v658
        %v663 = vpack.c.b16 %v661, %v660
        %v667 = vsel %vm563, %v647, 0
        %669 = vmatprep.subr.bf16.mxu0 0
        %670 = vmatpush1.bf16.msra.mxu0 0
        %671 = vmatprep.subr.bf16.mxu0 0
        %672 = vmatpush1.bf16.msra.mxu0 0
        %673 = vmatprep.subr.bf16.mxu0 0
        %674 = vmatpush1.bf16.msra.mxu0 0
        %675 = vmatprep.subr.bf16.mxu0 0
        %676 = vmatpush1.bf16.msra.mxu0 0
        %677 = vmatprep.subr.bf16.mxu0 0
        %678 = vmatpush1.bf16.msra.mxu0 0
        %679 = vmatprep.subr.bf16.mxu0 0
        %680 = vmatpush1.bf16.msra.mxu0 0
        %681 = vmatprep.subr.bf16.mxu0 0
        %682 = vmatpush1.bf16.msra.mxu0 %v663
        %683 = vmatprep.subr.bf16.mxu0 0
        %684 = vmatpush1.bf16.msra.mxu0 %v662
        %685 = vmatprep.subr.bf16.mxu0 0
        %686 = vmatpush2.bf16.msra.mxu0 0
        %687 = vmatprep.subr.bf16.mxu0 0
        %688 = vmatpush2.bf16.msra.mxu0 0
        %689 = vmatprep.subr.bf16.mxu0 0
        %690 = vmatpush2.bf16.msra.mxu0 0
        %691 = vmatprep.subr.bf16.mxu0 0
        %692 = vmatpush2.bf16.msra.mxu0 0
        %693 = vmatprep.subr.bf16.mxu0 0
        %694 = vmatpush2.bf16.msra.mxu0 0
        %695 = vmatprep.subr.bf16.mxu0 0
        %696 = vmatpush2.bf16.msra.mxu0 0
        %697 = vmatprep.subr.bf16.mxu0 0
        %698 = vmatpush2.bf16.msra.mxu0 0
        %699 = vmatprep.subr.bf16.mxu0 0
        %700 = vmatpush2.bf16.msra.mxu0 0
        %701 = vmatprep.mubr.bf16.mxu0 0
        %702 = vmatmul.mubr.bf16.gmra.mxu0 %v667
        %v703 = vpop.f32.mrf.mxu0
        %v704 = vadd.f32 %v652, %v703
        %v705 = vpop.f32.mrf.mxu0
        %v706 = vpop.f32.mrf.mxu0
        %v707 = vpop.f32.mrf.mxu0
        %708 = vdwg.mxu0
        %v709 = vmul.f32 %v704, 0.35355338
        %v710 = vpack.c.bf16 %v709, %v709
        %v711 = vpack.c.bf16 %v704, %v704
        %713 = vrot.lane.b32.xlu0 %v711, 96
        %v714 = vpop.permute.xlu0 %713
        %vm715 = vcmask 64512
        %v717 = vsel %vm715, %v710, 0
        %v720 = vsel %vm715, %v714, 0
        %722 = vmatprep.subr.bf16.mxu0 0
        %723 = vmatpush1.bf16.xpose.msra.mxu0 0
        %724 = vmatprep.subr.bf16.mxu0 0
        %725 = vmatpush1.bf16.xpose.msra.mxu0 0
        %726 = vmatprep.subr.bf16.mxu0 0
        %727 = vmatpush1.bf16.xpose.msra.mxu0 0
        %728 = vmatprep.subr.bf16.mxu0 0
        %729 = vmatpush1.bf16.xpose.msra.mxu0 0
        %730 = vmatprep.subr.bf16.mxu0 0
        %731 = vmatpush1.bf16.xpose.msra.mxu0 0
        %732 = vmatprep.subr.bf16.mxu0 0
        %733 = vmatpush1.bf16.xpose.msra.mxu0 0
        %734 = vmatprep.subr.bf16.mxu0 0
        %735 = vmatpush1.bf16.xpose.msra.mxu0 0
        %736 = vmatprep.subr.bf16.mxu0 0
        %737 = vmatpush1.bf16.xpose.msra.mxu0 %v720
        %738 = vmatprep.subr.bf16.mxu0 0
        %739 = vmatpush2.bf16.xpose.msra.mxu0 0
        %740 = vmatprep.subr.bf16.mxu0 0
        %741 = vmatpush2.bf16.xpose.msra.mxu0 0
        %742 = vmatprep.subr.bf16.mxu0 0
        %743 = vmatpush2.bf16.xpose.msra.mxu0 0
        %744 = vmatprep.subr.bf16.mxu0 0
        %745 = vmatpush2.bf16.xpose.msra.mxu0 0
        %746 = vmatprep.subr.bf16.mxu0 0
        %747 = vmatpush2.bf16.xpose.msra.mxu0 0
        %748 = vmatprep.subr.bf16.mxu0 0
        %749 = vmatpush2.bf16.xpose.msra.mxu0 0
        %750 = vmatprep.subr.bf16.mxu0 0
        %751 = vmatpush2.bf16.xpose.msra.mxu0 0
        %752 = vmatprep.subr.bf16.mxu0 0
        %753 = vmatpush2.bf16.xpose.msra.mxu0 0
        %754 = vmatprep.mubr.bf16.mxu0 0
        %755 = vmatmul.mubr.bf16.gmra.mxu0 %v717
        %v756 = vpop.f32.mrf.mxu0
        %v757 = vadd.f32 0.0, %v756
        %v758 = vpop.f32.mrf.mxu0
        %v759 = vpop.f32.mrf.mxu0
        %v760 = vpop.f32.mrf.mxu0
        %761 = vdwg.mxu0
        %v762 = vsel %vm715, %v757, -inf
        %763 = vmax.xlane.f32.xlu0 %v762
        %v764 = vpop.xlane.xlu0 %763
        %v765 = vsub.f32 %v757, %v764
        %v766 = vmul.f32 %v765, 1.442695
        %v767 = vpow.pop %v766
        %v768 = vsel %vm715, %v767, 0.0
        %769 = vadd.xlane.f32.xlu0 %v768
        %v770 = vpop.xlane.xlu0 %769
        %v771 = vrcp.pop %v770
        %v772 = vmul.f32 %v767, %v771
        %v773 = vpack.c.bf16 %v772, %v772
        %774 = vrot.lane.b32.xlu0 %v711, 64
        %v775 = vpop.permute.xlu0 %774
        %v777 = vsel %vm715, %v773, 0
        %vm779 = vcmask 1043456
        %v781 = vsel %vm779, %v775, 0
        %783 = vmatprep.subr.bf16.mxu0 0
        %784 = vmatpush1.bf16.msra.mxu0 0
        %785 = vmatprep.subr.bf16.mxu0 0
        %786 = vmatpush1.bf16.msra.mxu0 0
        %787 = vmatprep.subr.bf16.mxu0 0
        %788 = vmatpush1.bf16.msra.mxu0 0
        %789 = vmatprep.subr.bf16.mxu0 0
        %790 = vmatpush1.bf16.msra.mxu0 0
        %791 = vmatprep.subr.bf16.mxu0 0
        %792 = vmatpush1.bf16.msra.mxu0 0
        %793 = vmatprep.subr.bf16.mxu0 0
        %794 = vmatpush1.bf16.msra.mxu0 0
        %795 = vmatprep.subr.bf16.mxu0 0
        %796 = vmatpush1.bf16.msra.mxu0 0
        %797 = vmatprep.subr.bf16.mxu0 0
        %798 = vmatpush1.bf16.msra.mxu0 %v781
        %799 = vmatprep.subr.bf16.mxu0 0
        %800 = vmatpush2.bf16.msra.mxu0 0
        %801 = vmatprep.subr.bf16.mxu0 0
        %802 = vmatpush2.bf16.msra.mxu0 0
        %803 = vmatprep.subr.bf16.mxu0 0
        %804 = vmatpush2.bf16.msra.mxu0 0
        %805 = vmatprep.subr.bf16.mxu0 0
        %806 = vmatpush2.bf16.msra.mxu0 0
        %807 = vmatprep.subr.bf16.mxu0 0
        %808 = vmatpush2.bf16.msra.mxu0 0
        %809 = vmatprep.subr.bf16.mxu0 0
        %810 = vmatpush2.bf16.msra.mxu0 0
        %811 = vmatprep.subr.bf16.mxu0 0
        %812 = vmatpush2.bf16.msra.mxu0 0
        %813 = vmatprep.subr.bf16.mxu0 0
        %814 = vmatpush2.bf16.msra.mxu0 0
        %815 = vmatprep.mubr.bf16.mxu0 0
        %816 = vmatmul.mubr.bf16.gmra.mxu0 %v777
        %v817 = vpop.f32.mrf.mxu0
        %v818 = vadd.f32 0.0, %v817
        %v819 = vpop.f32.mrf.mxu0
        %v820 = vpop.f32.mrf.mxu0
        %v821 = vpop.f32.mrf.mxu0
        %822 = vdwg.mxu0
        %v823 = vpack.c.bf16 %v818, %v818
        %vm824 = vcmask 60416
        %825 = vst.msk [vmem:[#allocation2] sm:$0xf] %vm824, %v823
        %827 = vrot.lane.b32.xlu0 %v710, 120
        %v828 = vpop.permute.xlu0 %827
        %829 = vrot.lane.b32.xlu0 %v711, 88
        %v830 = vpop.permute.xlu0 %829
        %v832 = vsel %vm715, %v828, 0
        %v835 = vsel %vm715, %v830, 0
        %837 = vmatprep.subr.bf16.mxu0 0
        %838 = vmatpush1.bf16.xpose.msra.mxu0 0
        %839 = vmatprep.subr.bf16.mxu0 0
        %840 = vmatpush1.bf16.xpose.msra.mxu0 0
        %841 = vmatprep.subr.bf16.mxu0 0
        %842 = vmatpush1.bf16.xpose.msra.mxu0 0
        %843 = vmatprep.subr.bf16.mxu0 0
        %844 = vmatpush1.bf16.xpose.msra.mxu0 0
        %845 = vmatprep.subr.bf16.mxu0 0
        %846 = vmatpush1.bf16.xpose.msra.mxu0 0
        %847 = vmatprep.subr.bf16.mxu0 0
        %848 = vmatpush1.bf16.xpose.msra.mxu0 0
        %849 = vmatprep.subr.bf16.mxu0 0
        %850 = vmatpush1.bf16.xpose.msra.mxu0 0
        %851 = vmatprep.subr.bf16.mxu0 0
        %852 = vmatpush1.bf16.xpose.msra.mxu0 %v835
        %853 = vmatprep.subr.bf16.mxu0 0
        %854 = vmatpush2.bf16.xpose.msra.mxu0 0
        %855 = vmatprep.subr.bf16.mxu0 0
        %856 = vmatpush2.bf16.xpose.msra.mxu0 0
        %857 = vmatprep.subr.bf16.mxu0 0
        %858 = vmatpush2.bf16.xpose.msra.mxu0 0
        %859 = vmatprep.subr.bf16.mxu0 0
        %860 = vmatpush2.bf16.xpose.msra.mxu0 0
        %861 = vmatprep.subr.bf16.mxu0 0
        %862 = vmatpush2.bf16.xpose.msra.mxu0 0
        %863 = vmatprep.subr.bf16.mxu0 0
        %864 = vmatpush2.bf16.xpose.msra.mxu0 0
        %865 = vmatprep.subr.bf16.mxu0 0
        %866 = vmatpush2.bf16.xpose.msra.mxu0 0
        %867 = vmatprep.subr.bf16.mxu0 0
        %868 = vmatpush2.bf16.xpose.msra.mxu0 0
        %869 = vmatprep.mubr.bf16.mxu0 0
        %870 = vmatmul.mubr.bf16.gmra.mxu0 %v832
        %v871 = vpop.f32.mrf.mxu0
        %v872 = vadd.f32 0.0, %v871
        %v873 = vpop.f32.mrf.mxu0
        %v874 = vpop.f32.mrf.mxu0
        %v875 = vpop.f32.mrf.mxu0
        %876 = vdwg.mxu0
        %v877 = vsel %vm715, %v872, -inf
        %878 = vmax.xlane.f32.xlu0 %v877
        %v879 = vpop.xlane.xlu0 %878
        %v880 = vsub.f32 %v872, %v879
        %v881 = vmul.f32 %v880, 1.442695
        %v882 = vpow.pop %v881
        %v883 = vsel %vm715, %v882, 0.0
        %884 = vadd.xlane.f32.xlu0 %v883
        %v885 = vpop.xlane.xlu0 %884
        %v886 = vrcp.pop %v885
        %v887 = vmul.f32 %v882, %v886
        %v888 = vpack.c.bf16 %v887, %v887
        %889 = vrot.lane.b32.xlu0 %v711, 56
        %v890 = vpop.permute.xlu0 %889
        %v892 = vsel %vm715, %v888, 0
        %v895 = vsel %vm779, %v890, 0
        %897 = vmatprep.subr.bf16.mxu0 0
        %898 = vmatpush1.bf16.msra.mxu0 0
        %899 = vmatprep.subr.bf16.mxu0 0
        %900 = vmatpush1.bf16.msra.mxu0 0
        %901 = vmatprep.subr.bf16.mxu0 0
        %902 = vmatpush1.bf16.msra.mxu0 0
        %903 = vmatprep.subr.bf16.mxu0 0
        %904 = vmatpush1.bf16.msra.mxu0 0
        %905 = vmatprep.subr.bf16.mxu0 0
        %906 = vmatpush1.bf16.msra.mxu0 0
        %907 = vmatprep.subr.bf16.mxu0 0
        %908 = vmatpush1.bf16.msra.mxu0 0
        %909 = vmatprep.subr.bf16.mxu0 0
        %910 = vmatpush1.bf16.msra.mxu0 0
        %911 = vmatprep.subr.bf16.mxu0 0
        %912 = vmatpush1.bf16.msra.mxu0 %v895
        %913 = vmatprep.subr.bf16.mxu0 0
        %914 = vmatpush2.bf16.msra.mxu0 0
        %915 = vmatprep.subr.bf16.mxu0 0
        %916 = vmatpush2.bf16.msra.mxu0 0
        %917 = vmatprep.subr.bf16.mxu0 0
        %918 = vmatpush2.bf16.msra.mxu0 0
        %919 = vmatprep.subr.bf16.mxu0 0
        %920 = vmatpush2.bf16.msra.mxu0 0
        %921 = vmatprep.subr.bf16.mxu0 0
        %922 = vmatpush2.bf16.msra.mxu0 0
        %923 = vmatprep.subr.bf16.mxu0 0
        %924 = vmatpush2.bf16.msra.mxu0 0
        %925 = vmatprep.subr.bf16.mxu0 0
        %926 = vmatpush2.bf16.msra.mxu0 0
        %927 = vmatprep.subr.bf16.mxu0 0
        %928 = vmatpush2.bf16.msra.mxu0 0
        %929 = vmatprep.mubr.bf16.mxu0 0
        %930 = vmatmul.mubr.bf16.gmra.mxu0 %v892
        %v931 = vpop.f32.mrf.mxu0
        %v932 = vadd.f32 0.0, %v931
        %v933 = vpop.f32.mrf.mxu0
        %v934 = vpop.f32.mrf.mxu0
        %v935 = vpop.f32.mrf.mxu0
        %936 = vdwg.mxu0
        %v937 = vpack.c.bf16 %v932, %v932
        %v939 = vunpack.c.l.b16 %v937
        %v940 = vpack.c.b16 %v939, %v939
        %941 = vrot.lane.b32.xlu0 %v940, 8
        %v942 = vpop.permute.xlu0 %941
        %vm944 = vcmask 126016
        %945 = vst.msk [vmem:[#allocation2] sm:$0xf] %vm944, %v942
        %946 = vrot.lane.b32.xlu0 %v710, 112
        %v947 = vpop.permute.xlu0 %946
        %948 = vrot.lane.b32.xlu0 %v711, 80
        %v949 = vpop.permute.xlu0 %948
        %v951 = vsel %vm715, %v947, 0
        %v954 = vsel %vm715, %v949, 0
        %956 = vmatprep.subr.bf16.mxu0 0
        %957 = vmatpush1.bf16.xpose.msra.mxu0 0
        %958 = vmatprep.subr.bf16.mxu0 0
        %959 = vmatpush1.bf16.xpose.msra.mxu0 0
        %960 = vmatprep.subr.bf16.mxu0 0
        %961 = vmatpush1.bf16.xpose.msra.mxu0 0
        %962 = vmatprep.subr.bf16.mxu0 0
        %963 = vmatpush1.bf16.xpose.msra.mxu0 0
        %964 = vmatprep.subr.bf16.mxu0 0
        %965 = vmatpush1.bf16.xpose.msra.mxu0 0
        %966 = vmatprep.subr.bf16.mxu0 0
        %967 = vmatpush1.bf16.xpose.msra.mxu0 0
        %968 = vmatprep.subr.bf16.mxu0 0
        %969 = vmatpush1.bf16.xpose.msra.mxu0 0
        %970 = vmatprep.subr.bf16.mxu0 0
        %971 = vmatpush1.bf16.xpose.msra.mxu0 %v954
        %972 = vmatprep.subr.bf16.mxu0 0
        %973 = vmatpush2.bf16.xpose.msra.mxu0 0
        %974 = vmatprep.subr.bf16.mxu0 0
        %975 = vmatpush2.bf16.xpose.msra.mxu0 0
        %976 = vmatprep.subr.bf16.mxu0 0
        %977 = vmatpush2.bf16.xpose.msra.mxu0 0
        %978 = vmatprep.subr.bf16.mxu0 0
        %979 = vmatpush2.bf16.xpose.msra.mxu0 0
        %980 = vmatprep.subr.bf16.mxu0 0
        %981 = vmatpush2.bf16.xpose.msra.mxu0 0
        %982 = vmatprep.subr.bf16.mxu0 0
        %983 = vmatpush2.bf16.xpose.msra.mxu0 0
        %984 = vmatprep.subr.bf16.mxu0 0
        %985 = vmatpush2.bf16.xpose.msra.mxu0 0
        %986 = vmatprep.subr.bf16.mxu0 0
        %987 = vmatpush2.bf16.xpose.msra.mxu0 0
        %988 = vmatprep.mubr.bf16.mxu0 0
        %989 = vmatmul.mubr.bf16.gmra.mxu0 %v951
        %v990 = vpop.f32.mrf.mxu0
        %v991 = vadd.f32 0.0, %v990
        %v992 = vpop.f32.mrf.mxu0
        %v993 = vpop.f32.mrf.mxu0
        %v994 = vpop.f32.mrf.mxu0
        %995 = vdwg.mxu0
        %v996 = vsel %vm715, %v991, -inf
        %997 = vmax.xlane.f32.xlu0 %v996
        %v998 = vpop.xlane.xlu0 %997
        %v999 = vsub.f32 %v991, %v998
        %v1000 = vmul.f32 %v999, 1.442695
        %v1001 = vpow.pop %v1000
        %v1002 = vsel %vm715, %v1001, 0.0
        %1003 = vadd.xlane.f32.xlu0 %v1002
        %v1004 = vpop.xlane.xlu0 %1003
        %v1005 = vrcp.pop %v1004
        %v1006 = vmul.f32 %v1001, %v1005
        %v1007 = vpack.c.bf16 %v1006, %v1006
        %1008 = vrot.lane.b32.xlu0 %v711, 48
        %v1009 = vpop.permute.xlu0 %1008
        %v1011 = vsel %vm715, %v1007, 0
        %v1014 = vsel %vm779, %v1009, 0
        %1016 = vmatprep.subr.bf16.mxu0 0
        %1017 = vmatpush1.bf16.msra.mxu0 0
        %1018 = vmatprep.subr.bf16.mxu0 0
        %1019 = vmatpush1.bf16.msra.mxu0 0
        %1020 = vmatprep.subr.bf16.mxu0 0
        %1021 = vmatpush1.bf16.msra.mxu0 0
        %1022 = vmatprep.subr.bf16.mxu0 0
        %1023 = vmatpush1.bf16.msra.mxu0 0
        %1024 = vmatprep.subr.bf16.mxu0 0
        %1025 = vmatpush1.bf16.msra.mxu0 0
        %1026 = vmatprep.subr.bf16.mxu0 0
        %1027 = vmatpush1.bf16.msra.mxu0 0
        %1028 = vmatprep.subr.bf16.mxu0 0
        %1029 = vmatpush1.bf16.msra.mxu0 0
        %1030 = vmatprep.subr.bf16.mxu0 0
        %1031 = vmatpush1.bf16.msra.mxu0 %v1014
        %1032 = vmatprep.subr.bf16.mxu0 0
        %1033 = vmatpush2.bf16.msra.mxu0 0
        %1034 = vmatprep.subr.bf16.mxu0 0
        %1035 = vmatpush2.bf16.msra.mxu0 0
        %1036 = vmatprep.subr.bf16.mxu0 0
        %1037 = vmatpush2.bf16.msra.mxu0 0
        %1038 = vmatprep.subr.bf16.mxu0 0
        %1039 = vmatpush2.bf16.msra.mxu0 0
        %1040 = vmatprep.subr.bf16.mxu0 0
        %1041 = vmatpush2.bf16.msra.mxu0 0
        %1042 = vmatprep.subr.bf16.mxu0 0
        %1043 = vmatpush2.bf16.msra.mxu0 0
        %1044 = vmatprep.subr.bf16.mxu0 0
        %1045 = vmatpush2.bf16.msra.mxu0 0
        %1046 = vmatprep.subr.bf16.mxu0 0
        %1047 = vmatpush2.bf16.msra.mxu0 0
        %1048 = vmatprep.mubr.bf16.mxu0 0
        %1049 = vmatmul.mubr.bf16.gmra.mxu0 %v1011
        %v1050 = vpop.f32.mrf.mxu0
        %v1051 = vadd.f32 0.0, %v1050
        %v1052 = vpop.f32.mrf.mxu0
        %v1053 = vpop.f32.mrf.mxu0
        %v1054 = vpop.f32.mrf.mxu0
        %1055 = vdwg.mxu0
        %v1056 = vpack.c.bf16 %v1051, %v1051
        %v1058 = vunpack.c.l.b16 %v1056
        %v1059 = vpack.c.b16 %v1058, %v1058
        %1060 = vrot.lane.b32.xlu0 %v1059, 16
        %v1061 = vpop.permute.xlu0 %1060
        %vm1063 = vcmask 191616
        %1064 = vst.msk [vmem:[#allocation2] sm:$0xf] %vm1063, %v1061
        %1065 = vrot.lane.b32.xlu0 %v710, 104
        %v1066 = vpop.permute.xlu0 %1065
        %1067 = vrot.lane.b32.xlu0 %v711, 72
        %v1068 = vpop.permute.xlu0 %1067
        %v1070 = vsel %vm715, %v1066, 0
        %v1073 = vsel %vm715, %v1068, 0
        %1075 = vmatprep.subr.bf16.mxu0 0
        %1076 = vmatpush1.bf16.xpose.msra.mxu0 0
        %1077 = vmatprep.subr.bf16.mxu0 0
        %1078 = vmatpush1.bf16.xpose.msra.mxu0 0
        %1079 = vmatprep.subr.bf16.mxu0 0
        %1080 = vmatpush1.bf16.xpose.msra.mxu0 0
        %1081 = vmatprep.subr.bf16.mxu0 0
        %1082 = vmatpush1.bf16.xpose.msra.mxu0 0
        %1083 = vmatprep.subr.bf16.mxu0 0
        %1084 = vmatpush1.bf16.xpose.msra.mxu0 0
        %1085 = vmatprep.subr.bf16.mxu0 0
        %1086 = vmatpush1.bf16.xpose.msra.mxu0 0
        %1087 = vmatprep.subr.bf16.mxu0 0
        %1088 = vmatpush1.bf16.xpose.msra.mxu0 0
        %1089 = vmatprep.subr.bf16.mxu0 0
        %1090 = vmatpush1.bf16.xpose.msra.mxu0 %v1073
        %1091 = vmatprep.subr.bf16.mxu0 0
        %1092 = vmatpush2.bf16.xpose.msra.mxu0 0
        %1093 = vmatprep.subr.bf16.mxu0 0
        %1094 = vmatpush2.bf16.xpose.msra.mxu0 0
        %1095 = vmatprep.subr.bf16.mxu0 0
        %1096 = vmatpush2.bf16.xpose.msra.mxu0 0
        %1097 = vmatprep.subr.bf16.mxu0 0
        %1098 = vmatpush2.bf16.xpose.msra.mxu0 0
        %1099 = vmatprep.subr.bf16.mxu0 0
        %1100 = vmatpush2.bf16.xpose.msra.mxu0 0
        %1101 = vmatprep.subr.bf16.mxu0 0
        %1102 = vmatpush2.bf16.xpose.msra.mxu0 0
        %1103 = vmatprep.subr.bf16.mxu0 0
        %1104 = vmatpush2.bf16.xpose.msra.mxu0 0
        %1105 = vmatprep.subr.bf16.mxu0 0
        %1106 = vmatpush2.bf16.xpose.msra.mxu0 0
        %1107 = vmatprep.mubr.bf16.mxu0 0
        %1108 = vmatmul.mubr.bf16.gmra.mxu0 %v1070
        %v1109 = vpop.f32.mrf.mxu0
        %v1110 = vadd.f32 0.0, %v1109
        %v1111 = vpop.f32.mrf.mxu0
        %v1112 = vpop.f32.mrf.mxu0
        %v1113 = vpop.f32.mrf.mxu0
        %1114 = vdwg.mxu0
        %v1115 = vsel %vm715, %v1110, -inf
        %1116 = vmax.xlane.f32.xlu0 %v1115
        %v1117 = vpop.xlane.xlu0 %1116
        %v1118 = vsub.f32 %v1110, %v1117
        %v1119 = vmul.f32 %v1118, 1.442695
        %v1120 = vpow.pop %v1119
        %v1121 = vsel %vm715, %v1120, 0.0
        %1122 = vadd.xlane.f32.xlu0 %v1121
        %v1123 = vpop.xlane.xlu0 %1122
        %v1124 = vrcp.pop %v1123
        %v1125 = vmul.f32 %v1120, %v1124
        %v1126 = vpack.c.bf16 %v1125, %v1125
        %1127 = vrot.lane.b32.xlu0 %v711, 40
        %v1128 = vpop.permute.xlu0 %1127
        %v1130 = vsel %vm715, %v1126, 0
        %v1133 = vsel %vm779, %v1128, 0
        %1135 = vmatprep.subr.bf16.mxu0 0
        %1136 = vmatpush1.bf16.msra.mxu0 0
        %1137 = vmatprep.subr.bf16.mxu0 0
        %1138 = vmatpush1.bf16.msra.mxu0 0
        %1139 = vmatprep.subr.bf16.mxu0 0
        %1140 = vmatpush1.bf16.msra.mxu0 0
        %1141 = vmatprep.subr.bf16.mxu0 0
        %1142 = vmatpush1.bf16.msra.mxu0 0
        %1143 = vmatprep.subr.bf16.mxu0 0
        %1144 = vmatpush1.bf16.msra.mxu0 0
        %1145 = vmatprep.subr.bf16.mxu0 0
        %1146 = vmatpush1.bf16.msra.mxu0 0
        %1147 = vmatprep.subr.bf16.mxu0 0
        %1148 = vmatpush1.bf16.msra.mxu0 0
        %1149 = vmatprep.subr.bf16.mxu0 0
        %1150 = vmatpush1.bf16.msra.mxu0 %v1133
        %1151 = vmatprep.subr.bf16.mxu0 0
        %1152 = vmatpush2.bf16.msra.mxu0 0
        %1153 = vmatprep.subr.bf16.mxu0 0
        %1154 = vmatpush2.bf16.msra.mxu0 0
        %1155 = vmatprep.subr.bf16.mxu0 0
        %1156 = vmatpush2.bf16.msra.mxu0 0
        %1157 = vmatprep.subr.bf16.mxu0 0
        %1158 = vmatpush2.bf16.msra.mxu0 0
        %1159 = vmatprep.subr.bf16.mxu0 0
        %1160 = vmatpush2.bf16.msra.mxu0 0
        %1161 = vmatprep.subr.bf16.mxu0 0
        %1162 = vmatpush2.bf16.msra.mxu0 0
        %1163 = vmatprep.subr.bf16.mxu0 0
        %1164 = vmatpush2.bf16.msra.mxu0 0
        %1165 = vmatprep.subr.bf16.mxu0 0
        %1166 = vmatpush2.bf16.msra.mxu0 0
        %1167 = vmatprep.mubr.bf16.mxu0 0
        %1168 = vmatmul.mubr.bf16.gmra.mxu0 %v1130
        %v1169 = vpop.f32.mrf.mxu0
        %v1170 = vadd.f32 0.0, %v1169
        %v1171 = vpop.f32.mrf.mxu0
        %v1172 = vpop.f32.mrf.mxu0
        %v1173 = vpop.f32.mrf.mxu0
        %1174 = vdwg.mxu0
        %v1175 = vpack.c.bf16 %v1170, %v1170
        %v1177 = vunpack.c.l.b16 %v1175
        %v1178 = vpack.c.b16 %v1177, %v1177
        %1179 = vrot.lane.b32.xlu0 %v1178, 24
        %v1180 = vpop.permute.xlu0 %1179
        %vm1182 = vcmask 257216
        %1183 = vst.msk [vmem:[#allocation2] sm:$0xf] %vm1182, %v1180
        %v1184 = vld [vmem:[#allocation2] sm:$0xf]
        %v1185 = vlaneseq
        %v1186 = vshrl.u32 %v1185, 7
        %v1187 = vsub.s32 1, %v1186
        %v1188 = vrot.slane %v490, %v1187
        %v1193 = vunpack.c.l.b16 %v480
        %v1194 = vunpack.c.l.b16 %v481
        %v1195 = vunpack.c.l.b16 %v482
        %v1196 = vunpack.c.l.b16 %v483
        %v1197 = vpack.c.b16 %v1194, %v1193
        %v1198 = vpack.c.b16 %v1196, %v1195
        %v1202 = vsel %vm563, %v1184, 0
        %1204 = vmatprep.subr.bf16.mxu0 0
        %1205 = vmatpush1.bf16.msra.mxu0 0
        %1206 = vmatprep.subr.bf16.mxu0 0
        %1207 = vmatpush1.bf16.msra.mxu0 0
        %1208 = vmatprep.subr.bf16.mxu0 0
        %1209 = vmatpush1.bf16.msra.mxu0 0
        %1210 = vmatprep.subr.bf16.mxu0 0
        %1211 = vmatpush1.bf16.msra.mxu0 0
        %1212 = vmatprep.subr.bf16.mxu0 0
        %1213 = vmatpush1.bf16.msra.mxu0 0
        %1214 = vmatprep.subr.bf16.mxu0 0
        %1215 = vmatpush1.bf16.msra.mxu0 0
        %1216 = vmatprep.subr.bf16.mxu0 0
        %1217 = vmatpush1.bf16.msra.mxu0 %v1198
        %1218 = vmatprep.subr.bf16.mxu0 0
        %1219 = vmatpush1.bf16.msra.mxu0 %v1197
        %1220 = vmatprep.subr.bf16.mxu0 0
        %1221 = vmatpush2.bf16.msra.mxu0 0
        %1222 = vmatprep.subr.bf16.mxu0 0
        %1223 = vmatpush2.bf16.msra.mxu0 0
        %1224 = vmatprep.subr.bf16.mxu0 0
        %1225 = vmatpush2.bf16.msra.mxu0 0
        %1226 = vmatprep.subr.bf16.mxu0 0
        %1227 = vmatpush2.bf16.msra.mxu0 0
        %1228 = vmatprep.subr.bf16.mxu0 0
        %1229 = vmatpush2.bf16.msra.mxu0 0
        %1230 = vmatprep.subr.bf16.mxu0 0
        %1231 = vmatpush2.bf16.msra.mxu0 0
        %1232 = vmatprep.subr.bf16.mxu0 0
        %1233 = vmatpush2.bf16.msra.mxu0 0
        %1234 = vmatprep.subr.bf16.mxu0 0
        %1235 = vmatpush2.bf16.msra.mxu0 0
        %1236 = vmatprep.mubr.bf16.mxu0 0
        %1237 = vmatmul.mubr.bf16.gmra.mxu0 %v1202
        %v1238 = vpop.f32.mrf.mxu0
        %v1239 = vadd.f32 %v1188, %v1238
        %v1240 = vpop.f32.mrf.mxu0
        %v1241 = vpop.f32.mrf.mxu0
        %v1242 = vpop.f32.mrf.mxu0
        %1243 = vdwg.mxu0
        %v1244 = vadd.f32 %v1239, %v646
        %v1245 = vsel %vm563, %v1244, 0.0
        %1246 = vadd.xlane.f32.xlu0 %v1245
        %v1247 = vpop.xlane.xlu0 %1246
        %v1248 = vrcp.pop 32.0
        %v1249 = vmul.f32 %v1247, %v1248
        %v1250 = vsub.f32 %v1244, %v1249
        %v1251 = vmul.f32 %v1250, %v1250
        %v1252 = vsel %vm563, %v1251, 0.0
        %1253 = vadd.xlane.f32.xlu0 %v1252
        %v1254 = vpop.xlane.xlu0 %1253
        %v1255 = vmul.f32 %v1254, %v1248
        %v1256 = vadd.f32 %v1255, 1e-05
        %v1257 = vrsqrt.pop %v1256
        %v1258 = vmul.f32 %v1250, %v1257
        %v1259 = vlaneseq
        %v1260 = vshrl.u32 %v1259, 7
        %v1261 = vsub.s32 2, %v1260
        %v1262 = vrot.slane %v490, %v1261
        %v1263 = vmul.f32 %v1258, %v1262
        %v1264 = vlaneseq
        %v1265 = vshrl.u32 %v1264, 7
        %v1266 = vsub.s32 3, %v1265
        %v1267 = vrot.slane %v490, %v1266
        %v1268 = vadd.f32 %v1263, %v1267
        %v1269 = vpack.c.bf16 %v1268, %v1268
        %v1274 = vunpack.c.l.b16 %v485
        %v1275 = vunpack.c.l.b16 %v486
        %v1276 = vunpack.c.l.b16 %v487
        %v1277 = vunpack.c.l.b16 %v488
        %v1278 = vpack.c.b16 %v1275, %v1274
        %v1279 = vpack.c.b16 %v1277, %v1276
        %v1283 = vrot.slane %v490, 4
        %v1286 = vsel %vm563, %v1269, 0
        %1288 = vmatprep.subr.bf16.mxu0 0
        %1289 = vmatpush1.bf16.msra.mxu0 0
        %1290 = vmatprep.subr.bf16.mxu0 0
        %1291 = vmatpush1.bf16.msra.mxu0 0
        %1292 = vmatprep.subr.bf16.mxu0 0
        %1293 = vmatpush1.bf16.msra.mxu0 0
        %1294 = vmatprep.subr.bf16.mxu0 0
        %1295 = vmatpush1.bf16.msra.mxu0 0
        %1296 = vmatprep.subr.bf16.mxu0 0
        %1297 = vmatpush1.bf16.msra.mxu0 0
        %1298 = vmatprep.subr.bf16.mxu0 0
        %1299 = vmatpush1.bf16.msra.mxu0 0
        %1300 = vmatprep.subr.bf16.mxu0 0
        %1301 = vmatpush1.bf16.msra.mxu0 %v1279
        %1302 = vmatprep.subr.bf16.mxu0 0
        %1303 = vmatpush1.bf16.msra.mxu0 %v1278
        %1304 = vmatprep.subr.bf16.mxu0 0
        %1305 = vmatpush2.bf16.msra.mxu0 0
        %1306 = vmatprep.subr.bf16.mxu0 0
        %1307 = vmatpush2.bf16.msra.mxu0 0
        %1308 = vmatprep.subr.bf16.mxu0 0
        %1309 = vmatpush2.bf16.msra.mxu0 0
        %1310 = vmatprep.subr.bf16.mxu0 0
        %1311 = vmatpush2.bf16.msra.mxu0 0
        %1312 = vmatprep.subr.bf16.mxu0 0
        %1313 = vmatpush2.bf16.msra.mxu0 0
        %1314 = vmatprep.subr.bf16.mxu0 0
        %1315 = vmatpush2.bf16.msra.mxu0 0
        %1316 = vmatprep.subr.bf16.mxu0 0
        %1317 = vmatpush2.bf16.msra.mxu0 0
        %1318 = vmatprep.subr.bf16.mxu0 0
        %1319 = vmatpush2.bf16.msra.mxu0 0
        %1320 = vmatprep.mubr.bf16.mxu0 0
        %1321 = vmatmul.mubr.bf16.gmra.mxu0 %v1286
        %v1322 = vpop.f32.mrf.mxu0
        %v1323 = vadd.f32 %v1283, %v1322
        %v1324 = vpop.f32.mrf.mxu0
        %v1325 = vpop.f32.mrf.mxu0
        %v1326 = vpop.f32.mrf.mxu0
        %1327 = vdwg.mxu0
        %vm1328 = vcmask 253952
        %v1329 = vsel %vm1328, %v1323, 0.0
        %1330 = vadd.xlane.f32.xlu0 %v1329
        %v1331 = vpop.xlane.xlu0 %1330
        %v1332 = vmul.f32 %v1331, %v1248
        %v1333 = vsub.f32 %v1323, %v1332
        %v1334 = vmul.f32 %v1333, %v1333
        %v1335 = vsel %vm1328, %v1334, 0.0
        %1336 = vadd.xlane.f32.xlu0 %v1335
        %v1337 = vpop.xlane.xlu0 %1336
        %v1338 = vmul.f32 %v1337, %v1248
        %v1339 = vadd.f32 %v1338, 1e-05
        %v1340 = vrsqrt.pop %v1339
        %v1341 = vmul.f32 %v1333, %v1340
        %v1342 = vrot.slane %v490, 5
        %v1344 = vmul.f32 %v1341, %v1342
        %v1345 = vrot.slane %v490, 6
        %v1347 = vadd.f32 %v1344, %v1345
        %vm1348 = vcmask 58368
        %v1349 = vsel %vm1348, %v467, 0.0
        %1350 = vadd.xlane.f32.xlu0 %v1349
        %v1351 = vpop.xlane.xlu0 %1350
        %v1352 = vmax.f32 %v1351, 1e-09
        %v1353 = vrcp.pop %v1352
        %v1354 = vpack.c.bf16 %v467, %v467
        %v1356 = vsel %vm715, %v1354, 0
        %v1358 = vsel %vm779, %v1269, 0
        %1360 = vmatprep.subr.bf16.mxu0 0
        %1361 = vmatpush1.bf16.msra.mxu0 0
        %1362 = vmatprep.subr.bf16.mxu0 0
        %1363 = vmatpush1.bf16.msra.mxu0 0
        %1364 = vmatprep.subr.bf16.mxu0 0
        %1365 = vmatpush1.bf16.msra.mxu0 0
        %1366 = vmatprep.subr.bf16.mxu0 0
        %1367 = vmatpush1.bf16.msra.mxu0 0
        %1368 = vmatprep.subr.bf16.mxu0 0
        %1369 = vmatpush1.bf16.msra.mxu0 0
        %1370 = vmatprep.subr.bf16.mxu0 0
        %1371 = vmatpush1.bf16.msra.mxu0 0
        %1372 = vmatprep.subr.bf16.mxu0 0
        %1373 = vmatpush1.bf16.msra.mxu0 0
        %1374 = vmatprep.subr.bf16.mxu0 0
        %1375 = vmatpush1.bf16.msra.mxu0 %v1358
        %1376 = vmatprep.subr.bf16.mxu0 0
        %1377 = vmatpush2.bf16.msra.mxu0 0
        %1378 = vmatprep.subr.bf16.mxu0 0
        %1379 = vmatpush2.bf16.msra.mxu0 0
        %1380 = vmatprep.subr.bf16.mxu0 0
        %1381 = vmatpush2.bf16.msra.mxu0 0
        %1382 = vmatprep.subr.bf16.mxu0 0
        %1383 = vmatpush2.bf16.msra.mxu0 0
        %1384 = vmatprep.subr.bf16.mxu0 0
        %1385 = vmatpush2.bf16.msra.mxu0 0
        %1386 = vmatprep.subr.bf16.mxu0 0
        %1387 = vmatpush2.bf16.msra.mxu0 0
        %1388 = vmatprep.subr.bf16.mxu0 0
        %1389 = vmatpush2.bf16.msra.mxu0 0
        %1390 = vmatprep.subr.bf16.mxu0 0
        %1391 = vmatpush2.bf16.msra.mxu0 0
        %1392 = vmatprep.mubr.bf16.mxu0 0
        %1393 = vmatmul.mubr.bf16.gmra.mxu0 %v1356
        %v1394 = vpop.f32.mrf.mxu0
        %v1395 = vadd.f32 0.0, %v1394
        %v1396 = vpop.f32.mrf.mxu0
        %v1397 = vpop.f32.mrf.mxu0
        %v1398 = vpop.f32.mrf.mxu0
        %1399 = vdwg.mxu0
        %v1400 = vmul.f32 %v1395, %v1353
        %1401 = vst.msk [vmem:[%s449] sm:$0x1] %vm1328, %v1347
        %1403 = vrot.lane.b32.xlu0 %v1400, 32
        %v1404 = vpop.permute.xlu0 %1403
        %vm1406 = vcmask 516352
        %1407 = vst.msk [vmem:[%s449] sm:$0x1] %vm1406, %v1404
        %1408 = vrot.lane.b32.xlu0 %v1400, 64
        %v1409 = vpop.permute.xlu0 %1408
        %vm1411 = vcmask 779777
        %1412 = vst.msk [vmem:[%s449 - $0x1] sm:$0x2] %vm1411, %v1409
        %s1413 = sand.u32 %s273, 1
        %s1414 = scalar_lea.sflag [#allocation5], %s1413
        %s1415 = sand.u32 %s273, 1
        %s1416 = scalar_lea.vmem [#allocation8], %s1415
        // Predicated region
        $region69: #{tpu_custom_call.1} parent=59 // pred_check
          %p1417 = pneg %p283
        $region70: #{tpu_custom_call.1} parent=59 // pred_check_branch
          %1419 = sbr.rel (%p1417) target = $region72
        $region71: #{tpu_custom_call.1} parent=59 // pred_region
          %s1421 = ssub.s32 16, 16
          %1422 = vsyncadd %s1414, %s1421
          %s1423 = smul.addr %s30, 16
          %s1424 = scalar_lea.hbm %s10, %s1423
          %s1426 = sshll.u32 %s1416, 4
          %s1427 = int_to_ptr.vmem [resolvable:$true] %s1426
          %1429 = dma.vmem_to_hbm [thread:$0]  %s1427, 16, %s1424, %s1414
        $region72: #{tpu_custom_call.1} parent=59 // pred_fallthru
          _
      $region60: #{tpu_custom_call.1} parent=5 // pred_fallthru
        _
      %p1430 = scmp.le.s32.totalorder 2, %s25
      // Predicated region
      $region73: #{tpu_custom_call.1} parent=5 // pred_check
        %p1431 = pneg %p1430
      $region74: #{tpu_custom_call.1} parent=5 // pred_check_branch
        %1433 = sbr.rel (%p1431) target = $region76
      $region75: #{tpu_custom_call.1} parent=5 // pred_region
        %s1434 = ssub.s32 %s25, 2
        // Predicated region
        $region77: #{tpu_custom_call.1} parent=75 // pred_check
          %p1435 = pneg %p289
        $region78: #{tpu_custom_call.1} parent=75 // pred_check_branch
          %1437 = sbr.rel (%p1435) target = $region80
        $region79: #{tpu_custom_call.1} parent=75 // pred_region
          %s1438 = sand.u32 %s274, 1
          %s1439 = scalar_lea.sflag [#allocation5], %s1438
          %s1440 = sand.u32 %s274, 1
          %s1441 = scalar_lea.vmem [#allocation8], %s1440
          %1442 = dma.done %s1439, 16
        $region80: #{tpu_custom_call.1} parent=75 // pred_fallthru
          _
      $region76: #{tpu_custom_call.1} parent=5 // pred_fallthru
        _
    $region6: #{tpu_custom_call.1} parent=1 // loop_footer
      %s29 = sadd.s32 1, %s25
    $region7: #{tpu_custom_call.1} parent=1 // loop_footer_branch
      %24 = sbr.rel target = $region3
    $region8: #{tpu_custom_call.1} parent=1 // loop_exit
      _
    %1443 = vsyncpa [#allocation4], 1
    %s1444 = scalar_lea.sflag [#allocation4], 1
    %1445 = vsyncpa %s1444, 1
    %1446 = vsyncpa [#allocation7], 1
    %s1447 = scalar_lea.sflag [#allocation7], 1
    %1448 = vsyncpa %s1447, 1
    %1449 = vsyncpa [#allocation5], 1
    %s1450 = scalar_lea.sflag [#allocation5], 1
    %1451 = vsyncpa %s1450, 1

</llo_original>
